<compile_context>
chip_gen: v5e
topology: v5e:2x2
jax: 0.10.0
libtpu: 0.0.40
codegen_flags: <defaults>
</compile_context>

<pallas_src>
import jax
import jax.numpy as jnp
from jax.experimental import pallas as pl
from jax.experimental.pallas import tpu as pltpu


def _round_up(a, b):
    return (a + b - 1) // b * b


def mixer_kernel(x_ref, fg_ref, w1x_ref, w1f_ref, b1_ref, w2_ref, b2_ref, o_ref):
    x = x_ref[...]            # (rt, D)
    fg = fg_ref[...]          # (rt, 2D) = [local_feature | global_feature]
    D = x_ref.shape[-1]

    # First layer of both mixer blocks, fused along the output dim (width 2D).
    # concat([x, f]) @ W1^T == x @ W1x + f @ W1f  (split concat-matmul).
    h = jnp.dot(x, w1x_ref[...], preferred_element_type=jnp.float32)
    h = h + jnp.dot(fg, w1f_ref[...], preferred_element_type=jnp.float32)
    h = jnp.maximum(h + b1_ref[...], 0.0)                          # ReLU (f32)

    # Second layer of both blocks (block-diagonal weight), fused.
    dec = jnp.dot(h.astype(w2_ref.dtype), w2_ref[...],
                  preferred_element_type=jnp.float32) + b2_ref[...]

    # TODO(synk): nn.Dropout(0.3) is identity in eval mode; training-mode
    # stochastic dropout (pltpu.prng_random_bits masking) not implemented.
    o = (x.astype(jnp.float32) + dec[:, :D] + dec[:, D:]) * (1.0 / 3.0)
    o_ref[...] = o.astype(o_ref.dtype)


def init_mixer_params(key, d_model, dtype=jnp.float32):
    """Per-block raw params, stored transposed to (in, out) layout.
       Each block: Linear(2d -> d) = (w1 (2d,d), b1 (d,)), Linear(d -> d) = (w2, b2)."""
    raw = []
    for blk in range(2):  # 0: local, 1: global
        k = jax.random.fold_in(key, blk)
        k1, k2, k3, k4 = jax.random.split(k, 4)
        s1 = 1.0 / jnp.sqrt(2.0 * d_model)
        s2 = 1.0 / jnp.sqrt(1.0 * d_model)
        w1 = jax.random.uniform(k1, (2 * d_model, d_model), dtype, -s1, s1)
        b1 = jax.random.uniform(k2, (d_model,), dtype, -s1, s1)
        w2 = jax.random.uniform(k3, (d_model, d_model), dtype, -s2, s2)
        b2 = jax.random.uniform(k4, (d_model,), dtype, -s2, s2)
        raw.append((w1, b1, w2, b2))
    return raw


def pack_mixer_params(raw):
    """Fuse the two blocks' weights for the kernel (wide / block-diagonal layout)."""
    (w1_l, b1_l, w2_l, b2_l), (w1_g, b1_g, w2_g, b2_g) = raw
    D = w2_l.shape[0]
    dtype = w1_l.dtype
    w1x_l, w1f_l = w1_l[:D], w1_l[D:]
    w1x_g, w1f_g = w1_g[:D], w1_g[D:]
    zero = jnp.zeros((D, D), dtype)
    W1X = jnp.concatenate([w1x_l, w1x_g], axis=1)            # (D, 2D)
    W1F = jnp.block([[w1f_l, zero], [zero, w1f_g]])          # (2D, 2D) block-diag
    W2 = jnp.block([[w2_l, zero], [zero, w2_g]])             # (2D, 2D) block-diag
    B1 = jnp.concatenate([b1_l, b1_g]).reshape(1, 2 * D)
    B2 = jnp.concatenate([b2_l, b2_g]).reshape(1, 2 * D)
    return (W1X, W1F, B1, W2, B2)


def mixer_forward(x, local_feature, global_feature, packed_params, *,
                  row_tile=256, compute_dtype=None,
                  vmem_limit_bytes=32 * 1024 * 1024):
    B, L, D = x.shape
    M = B * L
    out_dtype = x.dtype
    W1X, W1F, B1, W2, B2 = packed_params

    x2 = x.reshape(M, D)
    fg2 = jnp.concatenate([local_feature.reshape(M, D),
                           global_feature.reshape(M, D)], axis=-1)   # (M, 2D)

    if compute_dtype is not None:
        # bf16 operands for the MXU; accumulation / bias / residual stay f32.
        x2 = x2.astype(compute_dtype)
        fg2 = fg2.astype(compute_dtype)
        W1X = W1X.astype(compute_dtype)
        W1F = W1F.astype(compute_dtype)
        W2 = W2.astype(compute_dtype)

    # Row tiling: big tiles amortize per-step overhead; pad rows to a multiple.
    rt = max(8, min(row_tile, _round_up(M, 8)))
    M_pad = _round_up(M, rt)
    if M_pad != M:
        pad = M_pad - M
        x2 = jnp.pad(x2, ((0, pad), (0, 0)))
        fg2 = jnp.pad(fg2, ((0, pad), (0, 0)))

    row_spec_x = pl.BlockSpec((rt, D), lambda i: (i, 0))
    row_spec_fg = pl.BlockSpec((rt, 2 * D), lambda i: (i, 0))
    out_spec = pl.BlockSpec((rt, D), lambda i: (i, 0))
    # Weights/biases: fully resident in VMEM, no per-step double-buffering.
    # TODO(synk): for very large d_model (weights > ~VMEM/4, esp. v7x 64 MiB),
    # add a second grid axis that tiles the weight output columns instead.
    resident = pl.BlockSpec(memory_space=pltpu.MemorySpace.VMEM)

    out = pl.pallas_call(
        mixer_kernel,
        out_shape=jax.ShapeDtypeStruct((M_pad, D), out_dtype),
        grid=(M_pad // rt,),
        in_specs=[row_spec_x, row_spec_fg,
                  resident, resident, resident, resident, resident],
        out_specs=out_spec,
        compiler_params=pltpu.CompilerParams(
            dimension_semantics=("parallel",),
            vmem_limit_bytes=vmem_limit_bytes),
    )(x2, fg2, W1X, W1F, B1, W2, B2)

    return out[:M].reshape(B, L, D)


def mixer_reference(x, lf, gf, raw_params):
    """Pure-JAX reference mirroring the PyTorch module (eval mode)."""
    def block(xi, f, w1, b1, w2, b2):
        h = jnp.maximum(jnp.concatenate([xi, f], axis=-1) @ w1 + b1, 0.0)
        return h @ w2 + b2
    (w1_l, b1_l, w2_l, b2_l), (w1_g, b1_g, w2_g, b2_g) = raw_params
    dec_l = block(x, lf, w1_l, b1_l, w2_l, b2_l)
    dec_g = block(x, gf, w1_g, b1_g, w2_g, b2_g)
    return (x + dec_l + dec_g) / 3.0


if __name__ == "__main__":
    # Lane-dense d_model (128) and enough rows for >=2 grid steps (feeds both
    # v7x TensorCores), while still being a small/fast test problem.
    B, L, D = 2, 256, 128
    key = jax.random.PRNGKey(0)
    kx, klf, kgf, kp = jax.random.split(key, 4)
    x = jax.random.normal(kx, (B, L, D), jnp.float32)
    local_feature = jax.random.normal(klf, (B, L, D), jnp.float32)
    global_feature = jax.random.normal(kgf, (B, L, D), jnp.float32)

    raw_params = init_mixer_params(kp, D)
    packed = pack_mixer_params(raw_params)

    # f32 path (exact vs reference).
    out = mixer_forward(x, local_feature, global_feature, packed, row_tile=256)
    out = jax.block_until_ready(out)
    ref = mixer_reference(x, local_feature, global_feature, raw_params)
    assert out.shape == (B, L, D)
    assert jnp.allclose(out, ref, atol=1e-5, rtol=1e-5), "f32 mismatch vs reference"

    # Non-divisible row count exercises the zero-padding / tail path.
    Bo, Lo = 2, 9
    xo = jax.random.normal(jax.random.fold_in(key, 7), (Bo, Lo, D), jnp.float32)
    lfo = jax.random.normal(jax.random.fold_in(key, 8), (Bo, Lo, D), jnp.float32)
    gfo = jax.random.normal(jax.random.fold_in(key, 9), (Bo, Lo, D), jnp.float32)
    out_o = jax.block_until_ready(
        mixer_forward(xo, lfo, gfo, packed, row_tile=256))
    ref_o = mixer_reference(xo, lfo, gfo, raw_params)
    assert jnp.allclose(out_o, ref_o, atol=1e-5, rtol=1e-5), "padded-tail mismatch"

    # bf16 MXU-operand path (f32 accumulation) — loose tolerance sanity check.
    out_bf16 = jax.block_until_ready(
        mixer_forward(x, local_feature, global_feature, packed,
                      row_tile=256, compute_dtype=jnp.bfloat16))
    assert jnp.allclose(out_bf16, ref, atol=1e-1, rtol=1e-1), "bf16 mismatch"

    print("KERNEL_OK")
</pallas_src>

<mosaic_0001>
module attributes {stable_mosaic.version = 11 : i64} {
  func.func @mixer_kernel(%arg0: i32, %arg1: memref<256x128xf32, #tpu.memory_space<vmem>>, %arg2: memref<256x256xf32, #tpu.memory_space<vmem>>, %arg3: memref<128x256xf32, #tpu.memory_space<vmem>>, %arg4: memref<256x256xf32, #tpu.memory_space<vmem>>, %arg5: memref<1x256xf32, #tpu.memory_space<vmem>>, %arg6: memref<256x256xf32, #tpu.memory_space<vmem>>, %arg7: memref<1x256xf32, #tpu.memory_space<vmem>>, %arg8: memref<256x128xf32, #tpu.memory_space<vmem>>) attributes {dimension_semantics = [#tpu.dimension_semantics<parallel>], iteration_bounds = array<i64: 2>, scalar_prefetch = 0 : i64, scratch_operands = 0 : i64, tpu.core_type = #tpu.core_type<tc>, window_params = [{transform_indices = @transform_0, window_bounds = array<i64: 256, 128>}, {transform_indices = @transform_1, window_bounds = array<i64: 256, 256>}, {pipeline_mode = #tpu.pipeline_mode<synchronous>, transform_indices = @transform_2, window_bounds = array<i64: 128, 256>}, {pipeline_mode = #tpu.pipeline_mode<synchronous>, transform_indices = @transform_3, window_bounds = array<i64: 256, 256>}, {pipeline_mode = #tpu.pipeline_mode<synchronous>, transform_indices = @transform_4, window_bounds = array<i64: 1, 256>}, {pipeline_mode = #tpu.pipeline_mode<synchronous>, transform_indices = @transform_5, window_bounds = array<i64: 256, 256>}, {pipeline_mode = #tpu.pipeline_mode<synchronous>, transform_indices = @transform_6, window_bounds = array<i64: 1, 256>}, {transform_indices = @transform_7, window_bounds = array<i64: 256, 128>}]} {
    %c0 = arith.constant 0 : index
    %c0_0 = arith.constant 0 : index
    %0 = vector.load %arg1[%c0, %c0_0] : memref<256x128xf32, #tpu.memory_space<vmem>>, vector<256x128xf32>
    %c0_1 = arith.constant 0 : index
    %c0_2 = arith.constant 0 : index
    %1 = vector.load %arg2[%c0_1, %c0_2] : memref<256x256xf32, #tpu.memory_space<vmem>>, vector<256x256xf32>
    %c0_3 = arith.constant 0 : index
    %c0_4 = arith.constant 0 : index
    %2 = vector.load %arg3[%c0_3, %c0_4] : memref<128x256xf32, #tpu.memory_space<vmem>>, vector<128x256xf32>
    %cst = arith.constant dense<0.000000e+00> : vector<256x256xf32>
    %3 = tpu.matmul %0, %2, %cst {dimension_numbers = #tpu.dot_dimension_numbers<[1], [0], [0], [1], [0, 0, 1, 1], [], []>} : vector<256x128xf32>, vector<128x256xf32>, vector<256x256xf32> -> vector<256x256xf32>
    %c0_5 = arith.constant 0 : index
    %c0_6 = arith.constant 0 : index
    %4 = vector.load %arg4[%c0_5, %c0_6] : memref<256x256xf32, #tpu.memory_space<vmem>>, vector<256x256xf32>
    %cst_7 = arith.constant dense<0.000000e+00> : vector<256x256xf32>
    %5 = tpu.matmul %1, %4, %cst_7 {dimension_numbers = #tpu.dot_dimension_numbers<[1], [0], [0], [1], [0, 0, 1, 1], [], []>} : vector<256x256xf32>, vector<256x256xf32>, vector<256x256xf32> -> vector<256x256xf32>
    %6 = arith.addf %3, %5 : vector<256x256xf32>
    %c0_8 = arith.constant 0 : index
    %c0_9 = arith.constant 0 : index
    %7 = vector.load %arg5[%c0_8, %c0_9] : memref<1x256xf32, #tpu.memory_space<vmem>>, vector<1x256xf32>
    %8 = vector.broadcast %7 : vector<1x256xf32> to vector<256x256xf32>
    %9 = arith.addf %6, %8 : vector<256x256xf32>
    %cst_10 = arith.constant 0.000000e+00 : f32
    %10 = vector.broadcast %cst_10 : f32 to vector<256x256xf32>
    %11 = arith.maximumf %9, %10 : vector<256x256xf32>
    %c0_11 = arith.constant 0 : index
    %c0_12 = arith.constant 0 : index
    %12 = vector.load %arg6[%c0_11, %c0_12] : memref<256x256xf32, #tpu.memory_space<vmem>>, vector<256x256xf32>
    %cst_13 = arith.constant dense<0.000000e+00> : vector<256x256xf32>
    %13 = tpu.matmul %11, %12, %cst_13 {dimension_numbers = #tpu.dot_dimension_numbers<[1], [0], [0], [1], [0, 0, 1, 1], [], []>} : vector<256x256xf32>, vector<256x256xf32>, vector<256x256xf32> -> vector<256x256xf32>
    %c0_14 = arith.constant 0 : index
    %c0_15 = arith.constant 0 : index
    %14 = vector.load %arg7[%c0_14, %c0_15] : memref<1x256xf32, #tpu.memory_space<vmem>>, vector<1x256xf32>
    %15 = vector.broadcast %14 : vector<1x256xf32> to vector<256x256xf32>
    %16 = arith.addf %13, %15 : vector<256x256xf32>
    %17 = vector.extract_strided_slice %16 {offsets = [0, 0], sizes = [256, 128], strides = [1, 1]} : vector<256x256xf32> to vector<256x128xf32>
    %18 = arith.addf %0, %17 : vector<256x128xf32>
    %19 = vector.extract_strided_slice %16 {offsets = [0, 128], sizes = [256, 128], strides = [1, 1]} : vector<256x256xf32> to vector<256x128xf32>
    %20 = arith.addf %18, %19 : vector<256x128xf32>
    %cst_16 = arith.constant 0.333333343 : f32
    %21 = vector.broadcast %cst_16 : f32 to vector<256x128xf32>
    %22 = arith.mulf %20, %21 : vector<256x128xf32>
    %c0_17 = arith.constant 0 : index
    %c0_18 = arith.constant 0 : index
    %23 = vector.load %arg8[%c0_17, %c0_18] : memref<256x128xf32, #tpu.memory_space<vmem>>, vector<256x128xf32>
    tpu.vector_store %arg8[%c0_17, %c0_18], %22 {strides = array<i32>} : memref<256x128xf32, #tpu.memory_space<vmem>>, vector<256x128xf32>,
    return
  }
  func.func @transform_0(%arg0: i32) -> (i32, i32) {
    %c0_i32 = arith.constant 0 : i32
    %c0_i32_0 = arith.constant 0 : i32
    return %arg0, %c0_i32 : i32, i32
  }
  func.func @transform_1(%arg0: i32) -> (i32, i32) {
    %c0_i32 = arith.constant 0 : i32
    %c0_i32_0 = arith.constant 0 : i32
    return %arg0, %c0_i32 : i32, i32
  }
  func.func @transform_2(%arg0: i32) -> (i32, i32) {
    %c0_i32 = arith.constant 0 : i32
    %c0_i32_0 = arith.constant 0 : i32
    %c0_i32_1 = arith.constant 0 : i32
    return %c0_i32, %c0_i32_0 : i32, i32
  }
  func.func @transform_3(%arg0: i32) -> (i32, i32) {
    %c0_i32 = arith.constant 0 : i32
    %c0_i32_0 = arith.constant 0 : i32
    %c0_i32_1 = arith.constant 0 : i32
    return %c0_i32, %c0_i32_0 : i32, i32
  }
  func.func @transform_4(%arg0: i32) -> (i32, i32) {
    %c0_i32 = arith.constant 0 : i32
    %c0_i32_0 = arith.constant 0 : i32
    %c0_i32_1 = arith.constant 0 : i32
    return %c0_i32, %c0_i32_0 : i32, i32
  }
  func.func @transform_5(%arg0: i32) -> (i32, i32) {
    %c0_i32 = arith.constant 0 : i32
    %c0_i32_0 = arith.constant 0 : i32
    %c0_i32_1 = arith.constant 0 : i32
    return %c0_i32, %c0_i32_0 : i32, i32
  }
  func.func @transform_6(%arg0: i32) -> (i32, i32) {
    %c0_i32 = arith.constant 0 : i32
    %c0_i32_0 = arith.constant 0 : i32
    %c0_i32_1 = arith.constant 0 : i32
    return %c0_i32, %c0_i32_0 : i32, i32
  }
  func.func @transform_7(%arg0: i32) -> (i32, i32) {
    %c0_i32 = arith.constant 0 : i32
    %c0_i32_0 = arith.constant 0 : i32
    return %arg0, %c0_i32 : i32, i32
  }
}

</mosaic_0001>

<llo_original>
// kernel: tpu_custom_call.1
$region0: #{tpu_custom_call.1}
  #allocation0 [shape = 'u32[]', space=smem, size = 0x4, offset = 0x4, fixed_abs, tag = 'smem constant byte address 0x4 - core index']
  #allocation1 [shape = 'u32[72,128]{1,0:T(1,128)}', space=vmem, size = 0x9000, scoped, tag = 'internal scratch']
  %s0 = inlined_call_operand.hbm [shape: f32[512,128], index: 0, kind: input, shape index: {}]
  %s1 = inlined_call_operand.hbm [shape: f32[512,256], index: 1, kind: input, shape index: {}]
  %s2 = inlined_call_operand.hbm [shape: f32[128,256], index: 2, kind: input, shape index: {}]
  %s3 = inlined_call_operand.hbm [shape: f32[256,256], index: 3, kind: input, shape index: {}]
  %s4 = inlined_call_operand.vmem [shape: f32[1,256], index: 4, kind: input, shape index: {}]
  %s5 = inlined_call_operand.hbm [shape: f32[256,256], index: 5, kind: input, shape index: {}]
  %s6 = inlined_call_operand.vmem [shape: f32[1,256], index: 6, kind: input, shape index: {}]
  %s7 = inlined_call_operand.hbm [shape: f32[512,128], index: 7, kind: output, shape index: {}]
  %s8 = sld [smem:[#allocation0]]
  $region81: #{tpu_custom_call.1} parent=0
    _
  %s10 = ssub.s32 1, %s8
  %s11 = scalar_select 0, %s10, %s8
  $region1: #{tpu_custom_call.1} parent=0
    #allocation2 [shape = 'u8[262144]{0}', space=vmem, size = 0x40000, scoped, tag = 'input window, operand 0']
    #allocation3 [shape = 's32[2]{0}', space=sflag, size = 0x8, scoped, tag = 'scoped memory for tpu_custom_call.1']
    #allocation4 [shape = 's32[2]{0}', space=sflag, size = 0x8, scoped, tag = 'scoped memory for tpu_custom_call.1']
    #allocation5 [shape = 'u8[524288]{0}', space=vmem, size = 0x80000, scoped, tag = 'input window, operand 1']
    #allocation6 [shape = 's32[2]{0}', space=sflag, size = 0x8, scoped, tag = 'scoped memory for tpu_custom_call.1']
    #allocation7 [shape = 'u8[131072]{0}', space=vmem, size = 0x20000, scoped, tag = 'input window, operand 2, single buffered']
    #allocation8 [shape = 'u8[262144]{0}', space=vmem, size = 0x40000, scoped, tag = 'input window, operand 3, single buffered']
    #allocation9 [shape = 's32[1]{0}', space=sflag, size = 0x4, scoped, tag = 'scoped memory for tpu_custom_call.1']
    #allocation10 [shape = 'u8[262144]{0}', space=vmem, size = 0x40000, scoped, tag = 'input window, operand 5, single buffered']
    #allocation11 [shape = 'u8[262144]{0}', space=vmem, size = 0x40000, scoped, tag = 'output window, operand 0']
    %12 = vsyncpa [#allocation3], 0
    %s13 = scalar_lea.sflag [#allocation3], 1
    %14 = vsyncpa %s13, 0
    %15 = vsyncpa [#allocation6], 0
    %s16 = scalar_lea.sflag [#allocation6], 1
    %17 = vsyncpa %s16, 0
    %18 = vsyncpa [#allocation9], 0
    %19 = vsyncpa [#allocation4], 0
    %s20 = scalar_lea.sflag [#allocation4], 1
    %21 = vsyncpa %s20, 0
    loop: start=0, step=1, limit=4
    $region2: #{tpu_custom_call.1} parent=1 // loop_pre_header
      _
    $region3: #{tpu_custom_call.1} parent=1 // loop_header
      %s23 = sphi 0, %s27
      %p24 = scmp.ge.s32.totalorder %s23, 4
      %s33 = sphi 0, %s35
      %s36 = sphi 0, %s33
      %s37 = sphi 0, %s36
      %s53 = sphi 0, %s37
      %s59 = sphi 0, %s61
      %s62 = sphi 0, %s59
      %s63 = sphi 0, %s62
      %s79 = sphi 0, %s63
      %s83 = sphi 0, %s83
      %s85 = sphi 0, %s83
      %s86 = sphi 0, %s85
      %s100 = sphi 0, %s86
      %s104 = sphi 0, %s104
      %s106 = sphi 0, %s104
      %s107 = sphi 0, %s106
      %s121 = sphi 0, %s107
      %s125 = sphi 0, %s125
      %s127 = sphi 0, %s125
      %s128 = sphi 0, %s127
      %s142 = sphi 0, %s128
      %s146 = sphi 0, %s146
      %s148 = sphi 0, %s146
      %s149 = sphi 0, %s148
      %s163 = sphi 0, %s149
      %s167 = sphi 0, %s167
      %s169 = sphi 0, %s167
      %s170 = sphi 0, %s169
      %s184 = sphi 0, %s170
      %s190 = sphi 0, %s192
      %s193 = sphi 0, %s190
      %s194 = sphi 0, %s193
      %s210 = sphi 0, %s194
    $region4: #{tpu_custom_call.1} parent=1 // loop_header_branch
      %26 = sbr.rel (%p24) target = $region8
    $region5: #{tpu_custom_call.1} parent=1 // loop_body
      %s28 = ssub.s32 %s23, 1
      %s29 = ssub.s32 %s23, 2
      %s30 = sadd.s32 %s23, 1
      %s31 = ssub.s32 %s23, %s30
      %p32 = scmp.eq.s32.totalorder %s31, 0
      %s34 = sadd.s32 %s33, 1
      %s35 = scalar_select %p32, %s33, %s34
      %p38 = pneg %p32
      %p39 = scmp.eq.s32.totalorder %s23, 1
      %p40 = por %p38, %p39
      %p41 = scmp.ne.s32.totalorder %s33, %s36
      %p42 = scmp.eq.s32.totalorder %s23, 0
      %p43 = por %p41, %p42
      %p44 = scmp.ne.s32.totalorder %s33, %s36
      %p45 = scmp.eq.s32.totalorder %s28, 1
      %p46 = por %p44, %p45
      %p47 = scmp.ne.s32.totalorder %s36, %s37
      %p48 = scmp.eq.s32.totalorder %s28, 0
      %p49 = por %p47, %p48
      %p50 = scmp.ne.s32.totalorder %s36, %s37
      %p51 = scmp.eq.s32.totalorder %s29, 1
      %p52 = por %p50, %p51
      %p54 = scmp.ne.s32.totalorder %s37, %s53
      %p55 = scmp.eq.s32.totalorder %s29, 0
      %p56 = por %p54, %p55
      %s57 = ssub.s32 %s23, %s30
      %p58 = scmp.eq.s32.totalorder %s57, 0
      %s60 = sadd.s32 %s59, 1
      %s61 = scalar_select %p58, %s59, %s60
      %p64 = pneg %p58
      %p65 = scmp.eq.s32.totalorder %s23, 1
      %p66 = por %p64, %p65
      %p67 = scmp.ne.s32.totalorder %s59, %s62
      %p68 = scmp.eq.s32.totalorder %s23, 0
      %p69 = por %p67, %p68
      %p70 = scmp.ne.s32.totalorder %s59, %s62
      %p71 = scmp.eq.s32.totalorder %s28, 1
      %p72 = por %p70, %p71
      %p73 = scmp.ne.s32.totalorder %s62, %s63
      %p74 = scmp.eq.s32.totalorder %s28, 0
      %p75 = por %p73, %p74
      %p76 = scmp.ne.s32.totalorder %s62, %s63
      %p77 = scmp.eq.s32.totalorder %s29, 1
      %p78 = por %p76, %p77
      %p80 = scmp.ne.s32.totalorder %s63, %s79
      %p81 = scmp.eq.s32.totalorder %s29, 0
      %p82 = por %p80, %p81
      %s84 = sadd.s32 %s83, 1
      %p87 = scmp.eq.s32.totalorder %s23, 1
      %p88 = scmp.ne.s32.totalorder %s83, %s85
      %p89 = scmp.eq.s32.totalorder %s23, 0
      %p90 = por %p88, %p89
      %p91 = scmp.ne.s32.totalorder %s83, %s85
      %p92 = scmp.eq.s32.totalorder %s28, 1
      %p93 = por %p91, %p92
      %p94 = scmp.ne.s32.totalorder %s85, %s86
      %p95 = scmp.eq.s32.totalorder %s28, 0
      %p96 = por %p94, %p95
      %p97 = scmp.ne.s32.totalorder %s85, %s86
      %p98 = scmp.eq.s32.totalorder %s29, 1
      %p99 = por %p97, %p98
      %p101 = scmp.ne.s32.totalorder %s86, %s100
      %p102 = scmp.eq.s32.totalorder %s29, 0
      %p103 = por %p101, %p102
      %s105 = sadd.s32 %s104, 1
      %p108 = scmp.eq.s32.totalorder %s23, 1
      %p109 = scmp.ne.s32.totalorder %s104, %s106
      %p110 = scmp.eq.s32.totalorder %s23, 0
      %p111 = por %p109, %p110
      %p112 = scmp.ne.s32.totalorder %s104, %s106
      %p113 = scmp.eq.s32.totalorder %s28, 1
      %p114 = por %p112, %p113
      %p115 = scmp.ne.s32.totalorder %s106, %s107
      %p116 = scmp.eq.s32.totalorder %s28, 0
      %p117 = por %p115, %p116
      %p118 = scmp.ne.s32.totalorder %s106, %s107
      %p119 = scmp.eq.s32.totalorder %s29, 1
      %p120 = por %p118, %p119
      %p122 = scmp.ne.s32.totalorder %s107, %s121
      %p123 = scmp.eq.s32.totalorder %s29, 0
      %p124 = por %p122, %p123
      %s126 = sadd.s32 %s125, 1
      %p129 = scmp.eq.s32.totalorder %s23, 1
      %p130 = scmp.ne.s32.totalorder %s125, %s127
      %p131 = scmp.eq.s32.totalorder %s23, 0
      %p132 = por %p130, %p131
      %p133 = scmp.ne.s32.totalorder %s125, %s127
      %p134 = scmp.eq.s32.totalorder %s28, 1
      %p135 = por %p133, %p134
      %p136 = scmp.ne.s32.totalorder %s127, %s128
      %p137 = scmp.eq.s32.totalorder %s28, 0
      %p138 = por %p136, %p137
      %p139 = scmp.ne.s32.totalorder %s127, %s128
      %p140 = scmp.eq.s32.totalorder %s29, 1
      %p141 = por %p139, %p140
      %p143 = scmp.ne.s32.totalorder %s128, %s142
      %p144 = scmp.eq.s32.totalorder %s29, 0
      %p145 = por %p143, %p144
      %s147 = sadd.s32 %s146, 1
      %p150 = scmp.eq.s32.totalorder %s23, 1
      %p151 = scmp.ne.s32.totalorder %s146, %s148
      %p152 = scmp.eq.s32.totalorder %s23, 0
      %p153 = por %p151, %p152
      %p154 = scmp.ne.s32.totalorder %s146, %s148
      %p155 = scmp.eq.s32.totalorder %s28, 1
      %p156 = por %p154, %p155
      %p157 = scmp.ne.s32.totalorder %s148, %s149
      %p158 = scmp.eq.s32.totalorder %s28, 0
      %p159 = por %p157, %p158
      %p160 = scmp.ne.s32.totalorder %s148, %s149
      %p161 = scmp.eq.s32.totalorder %s29, 1
      %p162 = por %p160, %p161
      %p164 = scmp.ne.s32.totalorder %s149, %s163
      %p165 = scmp.eq.s32.totalorder %s29, 0
      %p166 = por %p164, %p165
      %s168 = sadd.s32 %s167, 1
      %p171 = scmp.eq.s32.totalorder %s23, 1
      %p172 = scmp.ne.s32.totalorder %s167, %s169
      %p173 = scmp.eq.s32.totalorder %s23, 0
      %p174 = por %p172, %p173
      %p175 = scmp.ne.s32.totalorder %s167, %s169
      %p176 = scmp.eq.s32.totalorder %s28, 1
      %p177 = por %p175, %p176
      %p178 = scmp.ne.s32.totalorder %s169, %s170
      %p179 = scmp.eq.s32.totalorder %s28, 0
      %p180 = por %p178, %p179
      %p181 = scmp.ne.s32.totalorder %s169, %s170
      %p182 = scmp.eq.s32.totalorder %s29, 1
      %p183 = por %p181, %p182
      %p185 = scmp.ne.s32.totalorder %s170, %s184
      %p186 = scmp.eq.s32.totalorder %s29, 0
      %p187 = por %p185, %p186
      %s188 = ssub.s32 %s23, %s30
      %p189 = scmp.eq.s32.totalorder %s188, 0
      %s191 = sadd.s32 %s190, 1
      %s192 = scalar_select %p189, %s190, %s191
      %p195 = pneg %p189
      %p196 = scmp.eq.s32.totalorder %s23, 1
      %p197 = por %p195, %p196
      %p198 = scmp.ne.s32.totalorder %s190, %s193
      %p199 = scmp.eq.s32.totalorder %s23, 0
      %p200 = por %p198, %p199
      %p201 = scmp.ne.s32.totalorder %s190, %s193
      %p202 = scmp.eq.s32.totalorder %s28, 1
      %p203 = por %p201, %p202
      %p204 = scmp.ne.s32.totalorder %s193, %s194
      %p205 = scmp.eq.s32.totalorder %s28, 0
      %p206 = por %p204, %p205
      %p207 = scmp.ne.s32.totalorder %s193, %s194
      %p208 = scmp.eq.s32.totalorder %s29, 1
      %p209 = por %p207, %p208
      %p211 = scmp.ne.s32.totalorder %s194, %s210
      %p212 = scmp.eq.s32.totalorder %s29, 0
      %p213 = por %p211, %p212
      %p214 = scmp.le.s32.totalorder 1, %s23
      %p215 = scmp.lt.s32.totalorder %s23, 3
      %p216 = pnand %p214, %p215
      %p217 = pneg %p216
      // Predicated region
      $region9: #{tpu_custom_call.1} parent=5 // pred_check
        _
      $region10: #{tpu_custom_call.1} parent=5 // pred_check_branch
        %219 = sbr.rel (%p216) target = $region12
      $region11: #{tpu_custom_call.1} parent=5 // pred_region
        %s220 = ssub.s32 %s23, 1
        // Predicated region
        $region13: #{tpu_custom_call.1} parent=11 // pred_check
          %p221 = pneg %p96
        $region14: #{tpu_custom_call.1} parent=11 // pred_check_branch
          %223 = sbr.rel (%p221) target = $region16
        $region15: #{tpu_custom_call.1} parent=11 // pred_region
          %225 = vsyncadd [#allocation6], 0
          %s226 = sshll.u32 %s2, 4
          %s227 = int_to_ptr.hbm [resolvable:$true] %s226
          %s228 = sshll.u32 [#allocation7], 4
          %s229 = int_to_ptr.vmem [resolvable:$true] %s228
          %234 = dma.hbm_to_vmem [thread:$0]  %s227, 4096, %s229, [#allocation6], 256, 256, 16
        $region16: #{tpu_custom_call.1} parent=11 // pred_fallthru
          _
        // Predicated region
        $region17: #{tpu_custom_call.1} parent=11 // pred_check
          %p235 = pneg %p117
        $region18: #{tpu_custom_call.1} parent=11 // pred_check_branch
          %237 = sbr.rel (%p235) target = $region20
        $region19: #{tpu_custom_call.1} parent=11 // pred_region
          %239 = vsyncadd [#allocation9], 0
          %s240 = sshll.u32 %s3, 4
          %s241 = int_to_ptr.hbm [resolvable:$true] %s240
          %s242 = sshll.u32 [#allocation8], 4
          %s243 = int_to_ptr.vmem [resolvable:$true] %s242
          %248 = dma.hbm_to_vmem [thread:$0]  %s241, 8192, %s243, [#allocation9], 256, 256, 16
        $region20: #{tpu_custom_call.1} parent=11 // pred_fallthru
          _
        // Predicated region
        $region21: #{tpu_custom_call.1} parent=11 // pred_check
          %p249 = pneg %p138
        $region22: #{tpu_custom_call.1} parent=11 // pred_check_branch
          %251 = sbr.rel (%p249) target = $region24
        $region23: #{tpu_custom_call.1} parent=11 // pred_region
          _
        $region24: #{tpu_custom_call.1} parent=11 // pred_fallthru
          _
        // Predicated region
        $region25: #{tpu_custom_call.1} parent=11 // pred_check
          %p252 = pneg %p159
        $region26: #{tpu_custom_call.1} parent=11 // pred_check_branch
          %254 = sbr.rel (%p252) target = $region28
        $region27: #{tpu_custom_call.1} parent=11 // pred_region
          %256 = vsyncadd [#allocation9], 0
          %s257 = sshll.u32 %s5, 4
          %s258 = int_to_ptr.hbm [resolvable:$true] %s257
          %s259 = sshll.u32 [#allocation10], 4
          %s260 = int_to_ptr.vmem [resolvable:$true] %s259
          %265 = dma.hbm_to_vmem [thread:$0]  %s258, 8192, %s260, [#allocation9], 256, 256, 16
        $region28: #{tpu_custom_call.1} parent=11 // pred_fallthru
          _
        // Predicated region
        $region29: #{tpu_custom_call.1} parent=11 // pred_check
          %p266 = pneg %p180
        $region30: #{tpu_custom_call.1} parent=11 // pred_check_branch
          %268 = sbr.rel (%p266) target = $region32
        $region31: #{tpu_custom_call.1} parent=11 // pred_region
          _
        $region32: #{tpu_custom_call.1} parent=11 // pred_fallthru
          _
      $region12: #{tpu_custom_call.1} parent=5 // pred_fallthru
        _
      %p269 = scmp.lt.s32.totalorder %s23, 2
      // Predicated region
      $region33: #{tpu_custom_call.1} parent=5 // pred_check
        %p270 = pneg %p269
      $region34: #{tpu_custom_call.1} parent=5 // pred_check_branch
        %272 = sbr.rel (%p270) target = $region36
      $region35: #{tpu_custom_call.1} parent=5 // pred_region
        // Predicated region
        $region37: #{tpu_custom_call.1} parent=35 // pred_check
          %p273 = pneg %p43
        $region38: #{tpu_custom_call.1} parent=35 // pred_check_branch
          %275 = sbr.rel (%p273) target = $region40
        $region39: #{tpu_custom_call.1} parent=35 // pred_region
          %s276 = sand.u32 %s33, 1
          %s277 = scalar_lea.sflag [#allocation3], %s276
          %s278 = sand.u32 %s33, 1
          %s279 = smul.addr %s278, 256
          %s280 = scalar_lea.vmem [#allocation2], %s279
          %s281 = smul.u32 32, %s23
          %283 = vsyncadd %s277, 0
          %s284 = smul.addr %s281, 8
          %s285 = scalar_lea.hbm %s0, %s284
          %s286 = sshll.u32 %s285, 4
          %s287 = int_to_ptr.hbm [resolvable:$true] %s286
          %s288 = sshll.u32 %s280, 4
          %s289 = int_to_ptr.vmem [resolvable:$true] %s288
          %294 = dma.hbm_to_vmem [thread:$0]  %s287, 4096, %s289, %s277, 128, 128, 8
        $region40: #{tpu_custom_call.1} parent=35 // pred_fallthru
          _
        // Predicated region
        $region41: #{tpu_custom_call.1} parent=35 // pred_check
          %p295 = pneg %p69
        $region42: #{tpu_custom_call.1} parent=35 // pred_check_branch
          %297 = sbr.rel (%p295) target = $region44
        $region43: #{tpu_custom_call.1} parent=35 // pred_region
          %s298 = sand.u32 %s23, 1
          %s299 = scalar_lea.sflag [#allocation6], %s298
          %s300 = sand.u32 %s59, 1
          %s301 = smul.addr %s300, 512
          %s302 = scalar_lea.vmem [#allocation5], %s301
          %s303 = smul.u32 32, %s23
          %305 = vsyncadd %s299, 0
          %s306 = smul.addr %s303, 2
          %s307 = smul.addr %s306, 8
          %s308 = scalar_lea.hbm %s1, %s307
          %s309 = sshll.u32 %s308, 4
          %s310 = int_to_ptr.hbm [resolvable:$true] %s309
          %s311 = sshll.u32 %s302, 4
          %s312 = int_to_ptr.vmem [resolvable:$true] %s311
          %317 = dma.hbm_to_vmem [thread:$0]  %s310, 8192, %s312, %s299, 256, 256, 16
        $region44: #{tpu_custom_call.1} parent=35 // pred_fallthru
          _
      $region36: #{tpu_custom_call.1} parent=5 // pred_fallthru
        _
      %p318 = scmp.le.s32.totalorder 1, %s23
      %p319 = scmp.lt.s32.totalorder %s23, 3
      %p320 = pnand %p318, %p319
      %p321 = pneg %p320
      // Predicated region
      $region45: #{tpu_custom_call.1} parent=5 // pred_check
        _
      $region46: #{tpu_custom_call.1} parent=5 // pred_check_branch
        %323 = sbr.rel (%p320) target = $region48
      $region47: #{tpu_custom_call.1} parent=5 // pred_region
        %s324 = ssub.s32 %s23, 1
        %s325 = sand.u32 %s36, 1
        %s326 = scalar_lea.sflag [#allocation3], %s325
        %s327 = sand.u32 %s36, 1
        %s328 = smul.addr %s327, 256
        %s329 = scalar_lea.vmem [#allocation2], %s328
        // Predicated region
        $region49: #{tpu_custom_call.1} parent=47 // pred_check
          %p330 = pneg %p49
        $region50: #{tpu_custom_call.1} parent=47 // pred_check_branch
          %332 = sbr.rel (%p330) target = $region52
        $region51: #{tpu_custom_call.1} parent=47 // pred_region
          %334 = dma.done %s326, 4096
        $region52: #{tpu_custom_call.1} parent=47 // pred_fallthru
          _
        %s335 = sand.u32 %s28, 1
        %s336 = scalar_lea.sflag [#allocation6], %s335
        %s337 = sand.u32 %s62, 1
        %s338 = smul.addr %s337, 512
        %s339 = scalar_lea.vmem [#allocation5], %s338
        // Predicated region
        $region53: #{tpu_custom_call.1} parent=47 // pred_check
          %p340 = pneg %p75
        $region54: #{tpu_custom_call.1} parent=47 // pred_check_branch
          %342 = sbr.rel (%p340) target = $region56
        $region55: #{tpu_custom_call.1} parent=47 // pred_region
          %344 = dma.done %s336, 8192
        $region56: #{tpu_custom_call.1} parent=47 // pred_fallthru
          _
        // Predicated region
        $region57: #{tpu_custom_call.1} parent=47 // pred_check
          %p345 = pneg %p96
        $region58: #{tpu_custom_call.1} parent=47 // pred_check_branch
          %347 = sbr.rel (%p345) target = $region60
        $region59: #{tpu_custom_call.1} parent=47 // pred_region
          %349 = dma.done [#allocation6], 4096
        $region60: #{tpu_custom_call.1} parent=47 // pred_fallthru
          _
        // Predicated region
        $region61: #{tpu_custom_call.1} parent=47 // pred_check
          %p350 = pneg %p117
        $region62: #{tpu_custom_call.1} parent=47 // pred_check_branch
          %352 = sbr.rel (%p350) target = $region64
        $region63: #{tpu_custom_call.1} parent=47 // pred_region
          %354 = dma.done [#allocation9], 8192
        $region64: #{tpu_custom_call.1} parent=47 // pred_fallthru
          _
        // Predicated region
        $region65: #{tpu_custom_call.1} parent=47 // pred_check
          %p355 = pneg %p159
        $region66: #{tpu_custom_call.1} parent=47 // pred_check_branch
          %357 = sbr.rel (%p355) target = $region68
        $region67: #{tpu_custom_call.1} parent=47 // pred_region
          %359 = dma.done [#allocation9], 8192
        $region68: #{tpu_custom_call.1} parent=47 // pred_fallthru
          _
        %s360 = sand.u32 %s36, 1
        %s361 = scalar_lea.sflag [#allocation3], %s360
        %s362 = sand.u32 %s36, 1
        %s363 = smul.addr %s362, 256
        %s364 = scalar_lea.vmem [#allocation2], %s363
        %p365 = pneg %p49
        %p366 = pneg %p46
        %s367 = sand.u32 %s28, 1
        %s368 = scalar_lea.sflag [#allocation6], %s367
        %s369 = sand.u32 %s62, 1
        %s370 = smul.addr %s369, 512
        %s371 = scalar_lea.vmem [#allocation5], %s370
        %p372 = pneg %p75
        %p373 = pneg %p72
        %p374 = pneg %p96
        %p375 = pneg %p93
        %p376 = pneg %p117
        %p377 = pneg %p114
        %p378 = pneg %p138
        %p379 = pneg %p135
        %p380 = pneg %p159
        %p381 = pneg %p156
        %p382 = pneg %p180
        %p383 = pneg %p177
        %p384 = pneg %p206
        %p385 = pneg %p203
        %s386 = sand.u32 %s193, 1
        %s387 = scalar_lea.sflag [#allocation4], %s386
        %s388 = sand.u32 %s193, 1
        %s389 = smul.addr %s388, 256
        %s390 = scalar_lea.vmem [#allocation11], %s389
        %s391 = smul.u32 32, %s28
        %s392 = smul.u32 32, %s28
        %s393 = smul.u32 32, %s28
        %v394 = vld [vmem:[%s329] sm:$0xff]
        %v395 = vld [vmem:[%s329 + $0x8] sm:$0xff]
        %v396 = vld [vmem:[%s329 + $0x10] sm:$0xff]
        %v397 = vld [vmem:[%s329 + $0x18] sm:$0xff]
        %v398 = vld [vmem:[%s329 + $0x20] sm:$0xff]
        %v399 = vld [vmem:[%s329 + $0x28] sm:$0xff]
        %v400 = vld [vmem:[%s329 + $0x30] sm:$0xff]
        %v401 = vld [vmem:[%s329 + $0x38] sm:$0xff]
        %v402 = vld [vmem:[%s329 + $0x40] sm:$0xff]
        %v403 = vld [vmem:[%s329 + $0x48] sm:$0xff]
        %v404 = vld [vmem:[%s329 + $0x50] sm:$0xff]
        %v405 = vld [vmem:[%s329 + $0x58] sm:$0xff]
        %v406 = vld [vmem:[%s329 + $0x60] sm:$0xff]
        %v407 = vld [vmem:[%s329 + $0x68] sm:$0xff]
        %v408 = vld [vmem:[%s329 + $0x70] sm:$0xff]
        %v409 = vld [vmem:[%s329 + $0x78] sm:$0xff]
        %v410 = vld [vmem:[%s329 + $0x80] sm:$0xff]
        %v411 = vld [vmem:[%s329 + $0x88] sm:$0xff]
        %v412 = vld [vmem:[%s329 + $0x90] sm:$0xff]
        %v413 = vld [vmem:[%s329 + $0x98] sm:$0xff]
        %v414 = vld [vmem:[%s329 + $0xa0] sm:$0xff]
        %v415 = vld [vmem:[%s329 + $0xa8] sm:$0xff]
        %v416 = vld [vmem:[%s329 + $0xb0] sm:$0xff]
        %v417 = vld [vmem:[%s329 + $0xb8] sm:$0xff]
        %v418 = vld [vmem:[%s329 + $0xc0] sm:$0xff]
        %v419 = vld [vmem:[%s329 + $0xc8] sm:$0xff]
        %v420 = vld [vmem:[%s329 + $0xd0] sm:$0xff]
        %v421 = vld [vmem:[%s329 + $0xd8] sm:$0xff]
        %v422 = vld [vmem:[%s329 + $0xe0] sm:$0xff]
        %v423 = vld [vmem:[%s329 + $0xe8] sm:$0xff]
        %v424 = vld [vmem:[%s329 + $0xf0] sm:$0xff]
        %v425 = vld [vmem:[%s329 + $0xf8] sm:$0xff]
        %v426 = vld [vmem:[%s339] sm:$0xff]
        %v427 = vld [vmem:[%s339 + $0x8] sm:$0xff]
        %v428 = vld [vmem:[%s339 + $0x10] sm:$0xff]
        %v429 = vld [vmem:[%s339 + $0x18] sm:$0xff]
        %v430 = vld [vmem:[%s339 + $0x20] sm:$0xff]
        %v431 = vld [vmem:[%s339 + $0x28] sm:$0xff]
        %v432 = vld [vmem:[%s339 + $0x30] sm:$0xff]
        %v433 = vld [vmem:[%s339 + $0x38] sm:$0xff]
        %v434 = vld [vmem:[%s339 + $0x40] sm:$0xff]
        %v435 = vld [vmem:[%s339 + $0x48] sm:$0xff]
        %v436 = vld [vmem:[%s339 + $0x50] sm:$0xff]
        %v437 = vld [vmem:[%s339 + $0x58] sm:$0xff]
        %v438 = vld [vmem:[%s339 + $0x60] sm:$0xff]
        %v439 = vld [vmem:[%s339 + $0x68] sm:$0xff]
        %v440 = vld [vmem:[%s339 + $0x70] sm:$0xff]
        %v441 = vld [vmem:[%s339 + $0x78] sm:$0xff]
        %v442 = vld [vmem:[%s339 + $0x80] sm:$0xff]
        %v443 = vld [vmem:[%s339 + $0x88] sm:$0xff]
        %v444 = vld [vmem:[%s339 + $0x90] sm:$0xff]
        %v445 = vld [vmem:[%s339 + $0x98] sm:$0xff]
        %v446 = vld [vmem:[%s339 + $0xa0] sm:$0xff]
        %v447 = vld [vmem:[%s339 + $0xa8] sm:$0xff]
        %v448 = vld [vmem:[%s339 + $0xb0] sm:$0xff]
        %v449 = vld [vmem:[%s339 + $0xb8] sm:$0xff]
        %v450 = vld [vmem:[%s339 + $0xc0] sm:$0xff]
        %v451 = vld [vmem:[%s339 + $0xc8] sm:$0xff]
        %v452 = vld [vmem:[%s339 + $0xd0] sm:$0xff]
        %v453 = vld [vmem:[%s339 + $0xd8] sm:$0xff]
        %v454 = vld [vmem:[%s339 + $0xe0] sm:$0xff]
        %v455 = vld [vmem:[%s339 + $0xe8] sm:$0xff]
        %v456 = vld [vmem:[%s339 + $0xf0] sm:$0xff]
        %v457 = vld [vmem:[%s339 + $0xf8] sm:$0xff]
        %v458 = vld [vmem:[%s339 + $0x100] sm:$0xff]
        %v459 = vld [vmem:[%s339 + $0x108] sm:$0xff]
        %v460 = vld [vmem:[%s339 + $0x110] sm:$0xff]
        %v461 = vld [vmem:[%s339 + $0x118] sm:$0xff]
        %v462 = vld [vmem:[%s339 + $0x120] sm:$0xff]
        %v463 = vld [vmem:[%s339 + $0x128] sm:$0xff]
        %v464 = vld [vmem:[%s339 + $0x130] sm:$0xff]
        %v465 = vld [vmem:[%s339 + $0x138] sm:$0xff]
        %v466 = vld [vmem:[%s339 + $0x140] sm:$0xff]
        %v467 = vld [vmem:[%s339 + $0x148] sm:$0xff]
        %v468 = vld [vmem:[%s339 + $0x150] sm:$0xff]
        %v469 = vld [vmem:[%s339 + $0x158] sm:$0xff]
        %v470 = vld [vmem:[%s339 + $0x160] sm:$0xff]
        %v471 = vld [vmem:[%s339 + $0x168] sm:$0xff]
        %v472 = vld [vmem:[%s339 + $0x170] sm:$0xff]
        %v473 = vld [vmem:[%s339 + $0x178] sm:$0xff]
        %v474 = vld [vmem:[%s339 + $0x180] sm:$0xff]
        %v475 = vld [vmem:[%s339 + $0x188] sm:$0xff]
        %v476 = vld [vmem:[%s339 + $0x190] sm:$0xff]
        %v477 = vld [vmem:[%s339 + $0x198] sm:$0xff]
        %v478 = vld [vmem:[%s339 + $0x1a0] sm:$0xff]
        %v479 = vld [vmem:[%s339 + $0x1a8] sm:$0xff]
        %v480 = vld [vmem:[%s339 + $0x1b0] sm:$0xff]
        %v481 = vld [vmem:[%s339 + $0x1b8] sm:$0xff]
        %v482 = vld [vmem:[%s339 + $0x1c0] sm:$0xff]
        %v483 = vld [vmem:[%s339 + $0x1c8] sm:$0xff]
        %v484 = vld [vmem:[%s339 + $0x1d0] sm:$0xff]
        %v485 = vld [vmem:[%s339 + $0x1d8] sm:$0xff]
        %v486 = vld [vmem:[%s339 + $0x1e0] sm:$0xff]
        %v487 = vld [vmem:[%s339 + $0x1e8] sm:$0xff]
        %v488 = vld [vmem:[%s339 + $0x1f0] sm:$0xff]
        %v489 = vld [vmem:[%s339 + $0x1f8] sm:$0xff]
        %v490 = vld [vmem:[#allocation7] sm:$0xff]
        %v491 = vld [vmem:[#allocation7 + $0x8] sm:$0xff]
        %v492 = vld [vmem:[#allocation7 + $0x10] sm:$0xff]
        %v493 = vld [vmem:[#allocation7 + $0x18] sm:$0xff]
        %v494 = vld [vmem:[#allocation7 + $0x20] sm:$0xff]
        %v495 = vld [vmem:[#allocation7 + $0x28] sm:$0xff]
        %v496 = vld [vmem:[#allocation7 + $0x30] sm:$0xff]
        %v497 = vld [vmem:[#allocation7 + $0x38] sm:$0xff]
        %v498 = vld [vmem:[#allocation7 + $0x40] sm:$0xff]
        %v499 = vld [vmem:[#allocation7 + $0x48] sm:$0xff]
        %v500 = vld [vmem:[#allocation7 + $0x50] sm:$0xff]
        %v501 = vld [vmem:[#allocation7 + $0x58] sm:$0xff]
        %v502 = vld [vmem:[#allocation7 + $0x60] sm:$0xff]
        %v503 = vld [vmem:[#allocation7 + $0x68] sm:$0xff]
        %v504 = vld [vmem:[#allocation7 + $0x70] sm:$0xff]
        %v505 = vld [vmem:[#allocation7 + $0x78] sm:$0xff]
        %v506 = vld [vmem:[#allocation7 + $0x80] sm:$0xff]
        %v507 = vld [vmem:[#allocation7 + $0x88] sm:$0xff]
        %v508 = vld [vmem:[#allocation7 + $0x90] sm:$0xff]
        %v509 = vld [vmem:[#allocation7 + $0x98] sm:$0xff]
        %v510 = vld [vmem:[#allocation7 + $0xa0] sm:$0xff]
        %v511 = vld [vmem:[#allocation7 + $0xa8] sm:$0xff]
        %v512 = vld [vmem:[#allocation7 + $0xb0] sm:$0xff]
        %v513 = vld [vmem:[#allocation7 + $0xb8] sm:$0xff]
        %v514 = vld [vmem:[#allocation7 + $0xc0] sm:$0xff]
        %v515 = vld [vmem:[#allocation7 + $0xc8] sm:$0xff]
        %v516 = vld [vmem:[#allocation7 + $0xd0] sm:$0xff]
        %v517 = vld [vmem:[#allocation7 + $0xd8] sm:$0xff]
        %v518 = vld [vmem:[#allocation7 + $0xe0] sm:$0xff]
        %v519 = vld [vmem:[#allocation7 + $0xe8] sm:$0xff]
        %v520 = vld [vmem:[#allocation7 + $0xf0] sm:$0xff]
        %v521 = vld [vmem:[#allocation7 + $0xf8] sm:$0xff]
        %v522 = vld [vmem:[#allocation8] sm:$0xff]
        %v523 = vld [vmem:[#allocation8 + $0x8] sm:$0xff]
        %v524 = vld [vmem:[#allocation8 + $0x10] sm:$0xff]
        %v525 = vld [vmem:[#allocation8 + $0x18] sm:$0xff]
        %v526 = vld [vmem:[#allocation8 + $0x20] sm:$0xff]
        %v527 = vld [vmem:[#allocation8 + $0x28] sm:$0xff]
        %v528 = vld [vmem:[#allocation8 + $0x30] sm:$0xff]
        %v529 = vld [vmem:[#allocation8 + $0x38] sm:$0xff]
        %v530 = vld [vmem:[#allocation8 + $0x40] sm:$0xff]
        %v531 = vld [vmem:[#allocation8 + $0x48] sm:$0xff]
        %v532 = vld [vmem:[#allocation8 + $0x50] sm:$0xff]
        %v533 = vld [vmem:[#allocation8 + $0x58] sm:$0xff]
        %v534 = vld [vmem:[#allocation8 + $0x60] sm:$0xff]
        %v535 = vld [vmem:[#allocation8 + $0x68] sm:$0xff]
        %v536 = vld [vmem:[#allocation8 + $0x70] sm:$0xff]
        %v537 = vld [vmem:[#allocation8 + $0x78] sm:$0xff]
        %v538 = vld [vmem:[#allocation8 + $0x80] sm:$0xff]
        %v539 = vld [vmem:[#allocation8 + $0x88] sm:$0xff]
        %v540 = vld [vmem:[#allocation8 + $0x90] sm:$0xff]
        %v541 = vld [vmem:[#allocation8 + $0x98] sm:$0xff]
        %v542 = vld [vmem:[#allocation8 + $0xa0] sm:$0xff]
        %v543 = vld [vmem:[#allocation8 + $0xa8] sm:$0xff]
        %v544 = vld [vmem:[#allocation8 + $0xb0] sm:$0xff]
        %v545 = vld [vmem:[#allocation8 + $0xb8] sm:$0xff]
        %v546 = vld [vmem:[#allocation8 + $0xc0] sm:$0xff]
        %v547 = vld [vmem:[#allocation8 + $0xc8] sm:$0xff]
        %v548 = vld [vmem:[#allocation8 + $0xd0] sm:$0xff]
        %v549 = vld [vmem:[#allocation8 + $0xd8] sm:$0xff]
        %v550 = vld [vmem:[#allocation8 + $0xe0] sm:$0xff]
        %v551 = vld [vmem:[#allocation8 + $0xe8] sm:$0xff]
        %v552 = vld [vmem:[#allocation8 + $0xf0] sm:$0xff]
        %v553 = vld [vmem:[#allocation8 + $0xf8] sm:$0xff]
        %v554 = vld [vmem:[#allocation8 + $0x100] sm:$0xff]
        %v555 = vld [vmem:[#allocation8 + $0x108] sm:$0xff]
        %v556 = vld [vmem:[#allocation8 + $0x110] sm:$0xff]
        %v557 = vld [vmem:[#allocation8 + $0x118] sm:$0xff]
        %v558 = vld [vmem:[#allocation8 + $0x120] sm:$0xff]
        %v559 = vld [vmem:[#allocation8 + $0x128] sm:$0xff]
        %v560 = vld [vmem:[#allocation8 + $0x130] sm:$0xff]
        %v561 = vld [vmem:[#allocation8 + $0x138] sm:$0xff]
        %v562 = vld [vmem:[#allocation8 + $0x140] sm:$0xff]
        %v563 = vld [vmem:[#allocation8 + $0x148] sm:$0xff]
        %v564 = vld [vmem:[#allocation8 + $0x150] sm:$0xff]
        %v565 = vld [vmem:[#allocation8 + $0x158] sm:$0xff]
        %v566 = vld [vmem:[#allocation8 + $0x160] sm:$0xff]
        %v567 = vld [vmem:[#allocation8 + $0x168] sm:$0xff]
        %v568 = vld [vmem:[#allocation8 + $0x170] sm:$0xff]
        %v569 = vld [vmem:[#allocation8 + $0x178] sm:$0xff]
        %v570 = vld [vmem:[#allocation8 + $0x180] sm:$0xff]
        %v571 = vld [vmem:[#allocation8 + $0x188] sm:$0xff]
        %v572 = vld [vmem:[#allocation8 + $0x190] sm:$0xff]
        %v573 = vld [vmem:[#allocation8 + $0x198] sm:$0xff]
        %v574 = vld [vmem:[#allocation8 + $0x1a0] sm:$0xff]
        %v575 = vld [vmem:[#allocation8 + $0x1a8] sm:$0xff]
        %v576 = vld [vmem:[#allocation8 + $0x1b0] sm:$0xff]
        %v577 = vld [vmem:[#allocation8 + $0x1b8] sm:$0xff]
        %v578 = vld [vmem:[#allocation8 + $0x1c0] sm:$0xff]
        %v579 = vld [vmem:[#allocation8 + $0x1c8] sm:$0xff]
        %v580 = vld [vmem:[#allocation8 + $0x1d0] sm:$0xff]
        %v581 = vld [vmem:[#allocation8 + $0x1d8] sm:$0xff]
        %v582 = vld [vmem:[#allocation8 + $0x1e0] sm:$0xff]
        %v583 = vld [vmem:[#allocation8 + $0x1e8] sm:$0xff]
        %v584 = vld [vmem:[#allocation8 + $0x1f0] sm:$0xff]
        %v585 = vld [vmem:[#allocation8 + $0x1f8] sm:$0xff]
        %586 = vmatpush.msra.mxu0 %v552
        %587 = vmatpush.msra.mxu0 %v550
        %588 = vmatpush.msra.mxu0 %v548
        %589 = vmatpush.msra.mxu0 %v546
        %590 = vmatpush.msra.mxu0 %v544
        %591 = vmatpush.msra.mxu0 %v542
        %592 = vmatpush.msra.mxu0 %v540
        %593 = vmatpush.msra.mxu0 %v538
        %594 = vmatpush.msra.mxu0 %v536
        %595 = vmatpush.msra.mxu0 %v534
        %596 = vmatpush.msra.mxu0 %v532
        %597 = vmatpush.msra.mxu0 %v530
        %598 = vmatpush.msra.mxu0 %v528
        %599 = vmatpush.msra.mxu0 %v526
        %600 = vmatpush.msra.mxu0 %v524
        %601 = vmatpush.msra.mxu0 %v522
        %602 = vmatmul.f32.gmra.mxu0 %v426
        %v603 = vpop.f32.mrf.mxu0
        %v604 = vadd.f32 0.0, %v603
        %605 = vmatmul.f32.gmra.mxu0 %v428
        %v606 = vpop.f32.mrf.mxu0
        %v607 = vadd.f32 0.0, %v606
        %608 = vmatmul.f32.gmra.mxu0 %v430
        %v609 = vpop.f32.mrf.mxu0
        %v610 = vadd.f32 0.0, %v609
        %611 = vmatmul.f32.gmra.mxu0 %v432
        %v612 = vpop.f32.mrf.mxu0
        %v613 = vadd.f32 0.0, %v612
        %614 = vmatmul.f32.gmra.mxu0 %v434
        %v615 = vpop.f32.mrf.mxu0
        %v616 = vadd.f32 0.0, %v615
        %617 = vmatmul.f32.gmra.mxu0 %v436
        %v618 = vpop.f32.mrf.mxu0
        %v619 = vadd.f32 0.0, %v618
        %620 = vmatmul.f32.gmra.mxu0 %v438
        %v621 = vpop.f32.mrf.mxu0
        %v622 = vadd.f32 0.0, %v621
        %623 = vmatmul.f32.gmra.mxu0 %v440
        %v624 = vpop.f32.mrf.mxu0
        %v625 = vadd.f32 0.0, %v624
        %626 = vmatmul.f32.gmra.mxu0 %v442
        %v627 = vpop.f32.mrf.mxu0
        %v628 = vadd.f32 0.0, %v627
        %629 = vmatmul.f32.gmra.mxu0 %v444
        %v630 = vpop.f32.mrf.mxu0
        %v631 = vadd.f32 0.0, %v630
        %632 = vmatmul.f32.gmra.mxu0 %v446
        %v633 = vpop.f32.mrf.mxu0
        %v634 = vadd.f32 0.0, %v633
        %635 = vmatmul.f32.gmra.mxu0 %v448
        %v636 = vpop.f32.mrf.mxu0
        %v637 = vadd.f32 0.0, %v636
        %638 = vmatmul.f32.gmra.mxu0 %v450
        %v639 = vpop.f32.mrf.mxu0
        %v640 = vadd.f32 0.0, %v639
        %641 = vmatmul.f32.gmra.mxu0 %v452
        %v642 = vpop.f32.mrf.mxu0
        %v643 = vadd.f32 0.0, %v642
        %644 = vmatmul.f32.gmra.mxu0 %v454
        %v645 = vpop.f32.mrf.mxu0
        %v646 = vadd.f32 0.0, %v645
        %647 = vmatmul.f32.gmra.mxu0 %v456
        %v648 = vpop.f32.mrf.mxu0
        %v649 = vadd.f32 0.0, %v648
        %650 = vmatmul.f32.gmra.mxu0 %v458
        %v651 = vpop.f32.mrf.mxu0
        %v652 = vadd.f32 0.0, %v651
        %653 = vmatmul.f32.gmra.mxu0 %v460
        %v654 = vpop.f32.mrf.mxu0
        %v655 = vadd.f32 0.0, %v654
        %656 = vmatmul.f32.gmra.mxu0 %v462
        %v657 = vpop.f32.mrf.mxu0
        %v658 = vadd.f32 0.0, %v657
        %659 = vmatmul.f32.gmra.mxu0 %v464
        %v660 = vpop.f32.mrf.mxu0
        %v661 = vadd.f32 0.0, %v660
        %662 = vmatmul.f32.gmra.mxu0 %v466
        %v663 = vpop.f32.mrf.mxu0
        %v664 = vadd.f32 0.0, %v663
        %665 = vmatmul.f32.gmra.mxu0 %v468
        %v666 = vpop.f32.mrf.mxu0
        %v667 = vadd.f32 0.0, %v666
        %668 = vmatmul.f32.gmra.mxu0 %v470
        %v669 = vpop.f32.mrf.mxu0
        %v670 = vadd.f32 0.0, %v669
        %671 = vmatmul.f32.gmra.mxu0 %v472
        %v672 = vpop.f32.mrf.mxu0
        %v673 = vadd.f32 0.0, %v672
        %674 = vmatmul.f32.gmra.mxu0 %v474
        %v675 = vpop.f32.mrf.mxu0
        %v676 = vadd.f32 0.0, %v675
        %677 = vmatmul.f32.gmra.mxu0 %v476
        %v678 = vpop.f32.mrf.mxu0
        %v679 = vadd.f32 0.0, %v678
        %680 = vmatmul.f32.gmra.mxu0 %v478
        %v681 = vpop.f32.mrf.mxu0
        %v682 = vadd.f32 0.0, %v681
        %683 = vmatmul.f32.gmra.mxu0 %v480
        %v684 = vpop.f32.mrf.mxu0
        %v685 = vadd.f32 0.0, %v684
        %686 = vmatmul.f32.gmra.mxu0 %v482
        %v687 = vpop.f32.mrf.mxu0
        %v688 = vadd.f32 0.0, %v687
        %689 = vmatmul.f32.gmra.mxu0 %v484
        %v690 = vpop.f32.mrf.mxu0
        %v691 = vadd.f32 0.0, %v690
        %692 = vmatmul.f32.gmra.mxu0 %v486
        %v693 = vpop.f32.mrf.mxu0
        %v694 = vadd.f32 0.0, %v693
        %695 = vmatmul.f32.gmra.mxu0 %v488
        %v696 = vpop.f32.mrf.mxu0
        %v697 = vadd.f32 0.0, %v696
        %698 = vdwg.mxu0
        %699 = vmatpush.msra.mxu0 %v584
        %700 = vmatpush.msra.mxu0 %v582
        %701 = vmatpush.msra.mxu0 %v580
        %702 = vmatpush.msra.mxu0 %v578
        %703 = vmatpush.msra.mxu0 %v576
        %704 = vmatpush.msra.mxu0 %v574
        %705 = vmatpush.msra.mxu0 %v572
        %706 = vmatpush.msra.mxu0 %v570
        %707 = vmatpush.msra.mxu0 %v568
        %708 = vmatpush.msra.mxu0 %v566
        %709 = vmatpush.msra.mxu0 %v564
        %710 = vmatpush.msra.mxu0 %v562
        %711 = vmatpush.msra.mxu0 %v560
        %712 = vmatpush.msra.mxu0 %v558
        %713 = vmatpush.msra.mxu0 %v556
        %714 = vmatpush.msra.mxu0 %v554
        %715 = vmatmul.f32.gmra.mxu0 %v427
        %v716 = vpop.f32.mrf.mxu0
        %v717 = vadd.f32 %v604, %v716
        %718 = vmatmul.f32.gmra.mxu0 %v429
        %v719 = vpop.f32.mrf.mxu0
        %v720 = vadd.f32 %v607, %v719
        %721 = vmatmul.f32.gmra.mxu0 %v431
        %v722 = vpop.f32.mrf.mxu0
        %v723 = vadd.f32 %v610, %v722
        %724 = vmatmul.f32.gmra.mxu0 %v433
        %v725 = vpop.f32.mrf.mxu0
        %v726 = vadd.f32 %v613, %v725
        %727 = vmatmul.f32.gmra.mxu0 %v435
        %v728 = vpop.f32.mrf.mxu0
        %v729 = vadd.f32 %v616, %v728
        %730 = vmatmul.f32.gmra.mxu0 %v437
        %v731 = vpop.f32.mrf.mxu0
        %v732 = vadd.f32 %v619, %v731
        %733 = vmatmul.f32.gmra.mxu0 %v439
        %v734 = vpop.f32.mrf.mxu0
        %v735 = vadd.f32 %v622, %v734
        %736 = vmatmul.f32.gmra.mxu0 %v441
        %v737 = vpop.f32.mrf.mxu0
        %v738 = vadd.f32 %v625, %v737
        %739 = vmatmul.f32.gmra.mxu0 %v443
        %v740 = vpop.f32.mrf.mxu0
        %v741 = vadd.f32 %v628, %v740
        %742 = vmatmul.f32.gmra.mxu0 %v445
        %v743 = vpop.f32.mrf.mxu0
        %v744 = vadd.f32 %v631, %v743
        %745 = vmatmul.f32.gmra.mxu0 %v447
        %v746 = vpop.f32.mrf.mxu0
        %v747 = vadd.f32 %v634, %v746
        %748 = vmatmul.f32.gmra.mxu0 %v449
        %v749 = vpop.f32.mrf.mxu0
        %v750 = vadd.f32 %v637, %v749
        %751 = vmatmul.f32.gmra.mxu0 %v451
        %v752 = vpop.f32.mrf.mxu0
        %v753 = vadd.f32 %v640, %v752
        %754 = vmatmul.f32.gmra.mxu0 %v453
        %v755 = vpop.f32.mrf.mxu0
        %v756 = vadd.f32 %v643, %v755
        %757 = vmatmul.f32.gmra.mxu0 %v455
        %v758 = vpop.f32.mrf.mxu0
        %v759 = vadd.f32 %v646, %v758
        %760 = vmatmul.f32.gmra.mxu0 %v457
        %v761 = vpop.f32.mrf.mxu0
        %v762 = vadd.f32 %v649, %v761
        %763 = vmatmul.f32.gmra.mxu0 %v459
        %v764 = vpop.f32.mrf.mxu0
        %v765 = vadd.f32 %v652, %v764
        %766 = vmatmul.f32.gmra.mxu0 %v461
        %v767 = vpop.f32.mrf.mxu0
        %v768 = vadd.f32 %v655, %v767
        %769 = vmatmul.f32.gmra.mxu0 %v463
        %v770 = vpop.f32.mrf.mxu0
        %v771 = vadd.f32 %v658, %v770
        %772 = vmatmul.f32.gmra.mxu0 %v465
        %v773 = vpop.f32.mrf.mxu0
        %v774 = vadd.f32 %v661, %v773
        %775 = vmatmul.f32.gmra.mxu0 %v467
        %v776 = vpop.f32.mrf.mxu0
        %v777 = vadd.f32 %v664, %v776
        %778 = vmatmul.f32.gmra.mxu0 %v469
        %v779 = vpop.f32.mrf.mxu0
        %v780 = vadd.f32 %v667, %v779
        %781 = vmatmul.f32.gmra.mxu0 %v471
        %v782 = vpop.f32.mrf.mxu0
        %v783 = vadd.f32 %v670, %v782
        %784 = vmatmul.f32.gmra.mxu0 %v473
        %v785 = vpop.f32.mrf.mxu0
        %v786 = vadd.f32 %v673, %v785
        %787 = vmatmul.f32.gmra.mxu0 %v475
        %v788 = vpop.f32.mrf.mxu0
        %v789 = vadd.f32 %v676, %v788
        %790 = vmatmul.f32.gmra.mxu0 %v477
        %v791 = vpop.f32.mrf.mxu0
        %v792 = vadd.f32 %v679, %v791
        %793 = vmatmul.f32.gmra.mxu0 %v479
        %v794 = vpop.f32.mrf.mxu0
        %v795 = vadd.f32 %v682, %v794
        %796 = vmatmul.f32.gmra.mxu0 %v481
        %v797 = vpop.f32.mrf.mxu0
        %v798 = vadd.f32 %v685, %v797
        %799 = vmatmul.f32.gmra.mxu0 %v483
        %v800 = vpop.f32.mrf.mxu0
        %v801 = vadd.f32 %v688, %v800
        %802 = vmatmul.f32.gmra.mxu0 %v485
        %v803 = vpop.f32.mrf.mxu0
        %v804 = vadd.f32 %v691, %v803
        %805 = vmatmul.f32.gmra.mxu0 %v487
        %v806 = vpop.f32.mrf.mxu0
        %v807 = vadd.f32 %v694, %v806
        %808 = vmatmul.f32.gmra.mxu0 %v489
        %v809 = vpop.f32.mrf.mxu0
        %v810 = vadd.f32 %v697, %v809
        %811 = vdwg.mxu0
        %812 = vmatpush.msra.mxu0 %v553
        %813 = vmatpush.msra.mxu0 %v551
        %814 = vmatpush.msra.mxu0 %v549
        %815 = vmatpush.msra.mxu0 %v547
        %816 = vmatpush.msra.mxu0 %v545
        %817 = vmatpush.msra.mxu0 %v543
        %818 = vmatpush.msra.mxu0 %v541
        %819 = vmatpush.msra.mxu0 %v539
        %820 = vmatpush.msra.mxu0 %v537
        %821 = vmatpush.msra.mxu0 %v535
        %822 = vmatpush.msra.mxu0 %v533
        %823 = vmatpush.msra.mxu0 %v531
        %824 = vmatpush.msra.mxu0 %v529
        %825 = vmatpush.msra.mxu0 %v527
        %826 = vmatpush.msra.mxu0 %v525
        %827 = vmatpush.msra.mxu0 %v523
        %828 = vmatmul.f32.gmra.mxu0 %v426
        %v829 = vpop.f32.mrf.mxu0
        %v830 = vadd.f32 0.0, %v829
        %831 = vmatmul.f32.gmra.mxu0 %v428
        %v832 = vpop.f32.mrf.mxu0
        %v833 = vadd.f32 0.0, %v832
        %834 = vmatmul.f32.gmra.mxu0 %v430
        %v835 = vpop.f32.mrf.mxu0
        %v836 = vadd.f32 0.0, %v835
        %837 = vmatmul.f32.gmra.mxu0 %v432
        %v838 = vpop.f32.mrf.mxu0
        %v839 = vadd.f32 0.0, %v838
        %840 = vmatmul.f32.gmra.mxu0 %v434
        %v841 = vpop.f32.mrf.mxu0
        %v842 = vadd.f32 0.0, %v841
        %843 = vmatmul.f32.gmra.mxu0 %v436
        %v844 = vpop.f32.mrf.mxu0
        %v845 = vadd.f32 0.0, %v844
        %846 = vmatmul.f32.gmra.mxu0 %v438
        %v847 = vpop.f32.mrf.mxu0
        %v848 = vadd.f32 0.0, %v847
        %849 = vmatmul.f32.gmra.mxu0 %v440
        %v850 = vpop.f32.mrf.mxu0
        %v851 = vadd.f32 0.0, %v850
        %852 = vmatmul.f32.gmra.mxu0 %v442
        %v853 = vpop.f32.mrf.mxu0
        %v854 = vadd.f32 0.0, %v853
        %855 = vmatmul.f32.gmra.mxu0 %v444
        %v856 = vpop.f32.mrf.mxu0
        %v857 = vadd.f32 0.0, %v856
        %858 = vmatmul.f32.gmra.mxu0 %v446
        %v859 = vpop.f32.mrf.mxu0
        %v860 = vadd.f32 0.0, %v859
        %861 = vmatmul.f32.gmra.mxu0 %v448
        %v862 = vpop.f32.mrf.mxu0
        %v863 = vadd.f32 0.0, %v862
        %864 = vmatmul.f32.gmra.mxu0 %v450
        %v865 = vpop.f32.mrf.mxu0
        %v866 = vadd.f32 0.0, %v865
        %867 = vmatmul.f32.gmra.mxu0 %v452
        %v868 = vpop.f32.mrf.mxu0
        %v869 = vadd.f32 0.0, %v868
        %870 = vmatmul.f32.gmra.mxu0 %v454
        %v871 = vpop.f32.mrf.mxu0
        %v872 = vadd.f32 0.0, %v871
        %873 = vmatmul.f32.gmra.mxu0 %v456
        %v874 = vpop.f32.mrf.mxu0
        %v875 = vadd.f32 0.0, %v874
        %876 = vmatmul.f32.gmra.mxu0 %v458
        %v877 = vpop.f32.mrf.mxu0
        %v878 = vadd.f32 0.0, %v877
        %879 = vmatmul.f32.gmra.mxu0 %v460
        %v880 = vpop.f32.mrf.mxu0
        %v881 = vadd.f32 0.0, %v880
        %882 = vmatmul.f32.gmra.mxu0 %v462
        %v883 = vpop.f32.mrf.mxu0
        %v884 = vadd.f32 0.0, %v883
        %885 = vmatmul.f32.gmra.mxu0 %v464
        %v886 = vpop.f32.mrf.mxu0
        %v887 = vadd.f32 0.0, %v886
        %888 = vmatmul.f32.gmra.mxu0 %v466
        %v889 = vpop.f32.mrf.mxu0
        %v890 = vadd.f32 0.0, %v889
        %891 = vmatmul.f32.gmra.mxu0 %v468
        %v892 = vpop.f32.mrf.mxu0
        %v893 = vadd.f32 0.0, %v892
        %894 = vmatmul.f32.gmra.mxu0 %v470
        %v895 = vpop.f32.mrf.mxu0
        %v896 = vadd.f32 0.0, %v895
        %897 = vmatmul.f32.gmra.mxu0 %v472
        %v898 = vpop.f32.mrf.mxu0
        %v899 = vadd.f32 0.0, %v898
        %900 = vmatmul.f32.gmra.mxu0 %v474
        %v901 = vpop.f32.mrf.mxu0
        %v902 = vadd.f32 0.0, %v901
        %903 = vmatmul.f32.gmra.mxu0 %v476
        %v904 = vpop.f32.mrf.mxu0
        %v905 = vadd.f32 0.0, %v904
        %906 = vmatmul.f32.gmra.mxu0 %v478
        %v907 = vpop.f32.mrf.mxu0
        %v908 = vadd.f32 0.0, %v907
        %909 = vmatmul.f32.gmra.mxu0 %v480
        %v910 = vpop.f32.mrf.mxu0
        %v911 = vadd.f32 0.0, %v910
        %912 = vmatmul.f32.gmra.mxu0 %v482
        %v913 = vpop.f32.mrf.mxu0
        %v914 = vadd.f32 0.0, %v913
        %915 = vmatmul.f32.gmra.mxu0 %v484
        %v916 = vpop.f32.mrf.mxu0
        %v917 = vadd.f32 0.0, %v916
        %918 = vmatmul.f32.gmra.mxu0 %v486
        %v919 = vpop.f32.mrf.mxu0
        %v920 = vadd.f32 0.0, %v919
        %921 = vmatmul.f32.gmra.mxu0 %v488
        %v922 = vpop.f32.mrf.mxu0
        %v923 = vadd.f32 0.0, %v922
        %924 = vdwg.mxu0
        %925 = vmatpush.msra.mxu0 %v585
        %926 = vmatpush.msra.mxu0 %v583
        %927 = vmatpush.msra.mxu0 %v581
        %928 = vmatpush.msra.mxu0 %v579
        %929 = vmatpush.msra.mxu0 %v577
        %930 = vmatpush.msra.mxu0 %v575
        %931 = vmatpush.msra.mxu0 %v573
        %932 = vmatpush.msra.mxu0 %v571
        %933 = vmatpush.msra.mxu0 %v569
        %934 = vmatpush.msra.mxu0 %v567
        %935 = vmatpush.msra.mxu0 %v565
        %936 = vmatpush.msra.mxu0 %v563
        %937 = vmatpush.msra.mxu0 %v561
        %938 = vmatpush.msra.mxu0 %v559
        %939 = vmatpush.msra.mxu0 %v557
        %940 = vmatpush.msra.mxu0 %v555
        %941 = vmatmul.f32.gmra.mxu0 %v427
        %v942 = vpop.f32.mrf.mxu0
        %v943 = vadd.f32 %v830, %v942
        %944 = vmatmul.f32.gmra.mxu0 %v429
        %v945 = vpop.f32.mrf.mxu0
        %v946 = vadd.f32 %v833, %v945
        %947 = vmatmul.f32.gmra.mxu0 %v431
        %v948 = vpop.f32.mrf.mxu0
        %v949 = vadd.f32 %v836, %v948
        %950 = vmatmul.f32.gmra.mxu0 %v433
        %v951 = vpop.f32.mrf.mxu0
        %v952 = vadd.f32 %v839, %v951
        %953 = vmatmul.f32.gmra.mxu0 %v435
        %v954 = vpop.f32.mrf.mxu0
        %v955 = vadd.f32 %v842, %v954
        %956 = vmatmul.f32.gmra.mxu0 %v437
        %v957 = vpop.f32.mrf.mxu0
        %v958 = vadd.f32 %v845, %v957
        %959 = vmatmul.f32.gmra.mxu0 %v439
        %v960 = vpop.f32.mrf.mxu0
        %v961 = vadd.f32 %v848, %v960
        %962 = vmatmul.f32.gmra.mxu0 %v441
        %v963 = vpop.f32.mrf.mxu0
        %v964 = vadd.f32 %v851, %v963
        %965 = vmatmul.f32.gmra.mxu0 %v443
        %v966 = vpop.f32.mrf.mxu0
        %v967 = vadd.f32 %v854, %v966
        %968 = vmatmul.f32.gmra.mxu0 %v445
        %v969 = vpop.f32.mrf.mxu0
        %v970 = vadd.f32 %v857, %v969
        %971 = vmatmul.f32.gmra.mxu0 %v447
        %v972 = vpop.f32.mrf.mxu0
        %v973 = vadd.f32 %v860, %v972
        %974 = vmatmul.f32.gmra.mxu0 %v449
        %v975 = vpop.f32.mrf.mxu0
        %v976 = vadd.f32 %v863, %v975
        %977 = vmatmul.f32.gmra.mxu0 %v451
        %v978 = vpop.f32.mrf.mxu0
        %v979 = vadd.f32 %v866, %v978
        %980 = vmatmul.f32.gmra.mxu0 %v453
        %v981 = vpop.f32.mrf.mxu0
        %v982 = vadd.f32 %v869, %v981
        %983 = vmatmul.f32.gmra.mxu0 %v455
        %v984 = vpop.f32.mrf.mxu0
        %v985 = vadd.f32 %v872, %v984
        %986 = vmatmul.f32.gmra.mxu0 %v457
        %v987 = vpop.f32.mrf.mxu0
        %v988 = vadd.f32 %v875, %v987
        %989 = vmatmul.f32.gmra.mxu0 %v459
        %v990 = vpop.f32.mrf.mxu0
        %v991 = vadd.f32 %v878, %v990
        %992 = vmatmul.f32.gmra.mxu0 %v461
        %v993 = vpop.f32.mrf.mxu0
        %v994 = vadd.f32 %v881, %v993
        %995 = vmatmul.f32.gmra.mxu0 %v463
        %v996 = vpop.f32.mrf.mxu0
        %v997 = vadd.f32 %v884, %v996
        %998 = vmatmul.f32.gmra.mxu0 %v465
        %v999 = vpop.f32.mrf.mxu0
        %v1000 = vadd.f32 %v887, %v999
        %1001 = vmatmul.f32.gmra.mxu0 %v467
        %v1002 = vpop.f32.mrf.mxu0
        %v1003 = vadd.f32 %v890, %v1002
        %1004 = vmatmul.f32.gmra.mxu0 %v469
        %v1005 = vpop.f32.mrf.mxu0
        %v1006 = vadd.f32 %v893, %v1005
        %1007 = vmatmul.f32.gmra.mxu0 %v471
        %v1008 = vpop.f32.mrf.mxu0
        %v1009 = vadd.f32 %v896, %v1008
        %1010 = vmatmul.f32.gmra.mxu0 %v473
        %v1011 = vpop.f32.mrf.mxu0
        %v1012 = vadd.f32 %v899, %v1011
        %1013 = vmatmul.f32.gmra.mxu0 %v475
        %v1014 = vpop.f32.mrf.mxu0
        %v1015 = vadd.f32 %v902, %v1014
        %1016 = vmatmul.f32.gmra.mxu0 %v477
        %v1017 = vpop.f32.mrf.mxu0
        %v1018 = vadd.f32 %v905, %v1017
        %1019 = vmatmul.f32.gmra.mxu0 %v479
        %v1020 = vpop.f32.mrf.mxu0
        %v1021 = vadd.f32 %v908, %v1020
        %1022 = vmatmul.f32.gmra.mxu0 %v481
        %v1023 = vpop.f32.mrf.mxu0
        %v1024 = vadd.f32 %v911, %v1023
        %1025 = vmatmul.f32.gmra.mxu0 %v483
        %v1026 = vpop.f32.mrf.mxu0
        %v1027 = vadd.f32 %v914, %v1026
        %1028 = vmatmul.f32.gmra.mxu0 %v485
        %v1029 = vpop.f32.mrf.mxu0
        %v1030 = vadd.f32 %v917, %v1029
        %1031 = vmatmul.f32.gmra.mxu0 %v487
        %v1032 = vpop.f32.mrf.mxu0
        %v1033 = vadd.f32 %v920, %v1032
        %1034 = vmatmul.f32.gmra.mxu0 %v489
        %v1035 = vpop.f32.mrf.mxu0
        %v1036 = vadd.f32 %v923, %v1035
        %1037 = vdwg.mxu0
        %1038 = vmatpush.msra.mxu0 %v520
        %1039 = vmatpush.msra.mxu0 %v518
        %1040 = vmatpush.msra.mxu0 %v516
        %1041 = vmatpush.msra.mxu0 %v514
        %1042 = vmatpush.msra.mxu0 %v512
        %1043 = vmatpush.msra.mxu0 %v510
        %1044 = vmatpush.msra.mxu0 %v508
        %1045 = vmatpush.msra.mxu0 %v506
        %1046 = vmatpush.msra.mxu0 %v504
        %1047 = vmatpush.msra.mxu0 %v502
        %1048 = vmatpush.msra.mxu0 %v500
        %1049 = vmatpush.msra.mxu0 %v498
        %1050 = vmatpush.msra.mxu0 %v496
        %1051 = vmatpush.msra.mxu0 %v494
        %1052 = vmatpush.msra.mxu0 %v492
        %1053 = vmatpush.msra.mxu0 %v490
        %1054 = vmatmul.f32.gmra.mxu0 %v394
        %v1055 = vpop.f32.mrf.mxu0
        %v1056 = vadd.f32 %v717, %v1055
        %1057 = vmatmul.f32.gmra.mxu0 %v395
        %v1058 = vpop.f32.mrf.mxu0
        %v1059 = vadd.f32 %v720, %v1058
        %1060 = vmatmul.f32.gmra.mxu0 %v396
        %v1061 = vpop.f32.mrf.mxu0
        %v1062 = vadd.f32 %v723, %v1061
        %1063 = vmatmul.f32.gmra.mxu0 %v397
        %v1064 = vpop.f32.mrf.mxu0
        %v1065 = vadd.f32 %v726, %v1064
        %1066 = vmatmul.f32.gmra.mxu0 %v398
        %v1067 = vpop.f32.mrf.mxu0
        %v1068 = vadd.f32 %v729, %v1067
        %1069 = vmatmul.f32.gmra.mxu0 %v399
        %v1070 = vpop.f32.mrf.mxu0
        %v1071 = vadd.f32 %v732, %v1070
        %1072 = vmatmul.f32.gmra.mxu0 %v400
        %v1073 = vpop.f32.mrf.mxu0
        %v1074 = vadd.f32 %v735, %v1073
        %1075 = vmatmul.f32.gmra.mxu0 %v401
        %v1076 = vpop.f32.mrf.mxu0
        %v1077 = vadd.f32 %v738, %v1076
        %1078 = vmatmul.f32.gmra.mxu0 %v402
        %v1079 = vpop.f32.mrf.mxu0
        %v1080 = vadd.f32 %v741, %v1079
        %1081 = vmatmul.f32.gmra.mxu0 %v403
        %v1082 = vpop.f32.mrf.mxu0
        %v1083 = vadd.f32 %v744, %v1082
        %1084 = vmatmul.f32.gmra.mxu0 %v404
        %v1085 = vpop.f32.mrf.mxu0
        %v1086 = vadd.f32 %v747, %v1085
        %1087 = vmatmul.f32.gmra.mxu0 %v405
        %v1088 = vpop.f32.mrf.mxu0
        %v1089 = vadd.f32 %v750, %v1088
        %1090 = vmatmul.f32.gmra.mxu0 %v406
        %v1091 = vpop.f32.mrf.mxu0
        %v1092 = vadd.f32 %v753, %v1091
        %1093 = vmatmul.f32.gmra.mxu0 %v407
        %v1094 = vpop.f32.mrf.mxu0
        %v1095 = vadd.f32 %v756, %v1094
        %1096 = vmatmul.f32.gmra.mxu0 %v408
        %v1097 = vpop.f32.mrf.mxu0
        %v1098 = vadd.f32 %v759, %v1097
        %1099 = vmatmul.f32.gmra.mxu0 %v409
        %v1100 = vpop.f32.mrf.mxu0
        %v1101 = vadd.f32 %v762, %v1100
        %1102 = vmatmul.f32.gmra.mxu0 %v410
        %v1103 = vpop.f32.mrf.mxu0
        %v1104 = vadd.f32 %v765, %v1103
        %1105 = vmatmul.f32.gmra.mxu0 %v411
        %v1106 = vpop.f32.mrf.mxu0
        %v1107 = vadd.f32 %v768, %v1106
        %1108 = vmatmul.f32.gmra.mxu0 %v412
        %v1109 = vpop.f32.mrf.mxu0
        %v1110 = vadd.f32 %v771, %v1109
        %1111 = vmatmul.f32.gmra.mxu0 %v413
        %v1112 = vpop.f32.mrf.mxu0
        %v1113 = vadd.f32 %v774, %v1112
        %1114 = vmatmul.f32.gmra.mxu0 %v414
        %v1115 = vpop.f32.mrf.mxu0
        %v1116 = vadd.f32 %v777, %v1115
        %1117 = vmatmul.f32.gmra.mxu0 %v415
        %v1118 = vpop.f32.mrf.mxu0
        %v1119 = vadd.f32 %v780, %v1118
        %1120 = vmatmul.f32.gmra.mxu0 %v416
        %v1121 = vpop.f32.mrf.mxu0
        %v1122 = vadd.f32 %v783, %v1121
        %1123 = vmatmul.f32.gmra.mxu0 %v417
        %v1124 = vpop.f32.mrf.mxu0
        %v1125 = vadd.f32 %v786, %v1124
        %1126 = vmatmul.f32.gmra.mxu0 %v418
        %v1127 = vpop.f32.mrf.mxu0
        %v1128 = vadd.f32 %v789, %v1127
        %1129 = vmatmul.f32.gmra.mxu0 %v419
        %v1130 = vpop.f32.mrf.mxu0
        %v1131 = vadd.f32 %v792, %v1130
        %1132 = vmatmul.f32.gmra.mxu0 %v420
        %v1133 = vpop.f32.mrf.mxu0
        %v1134 = vadd.f32 %v795, %v1133
        %1135 = vmatmul.f32.gmra.mxu0 %v421
        %v1136 = vpop.f32.mrf.mxu0
        %v1137 = vadd.f32 %v798, %v1136
        %1138 = vmatmul.f32.gmra.mxu0 %v422
        %v1139 = vpop.f32.mrf.mxu0
        %v1140 = vadd.f32 %v801, %v1139
        %1141 = vmatmul.f32.gmra.mxu0 %v423
        %v1142 = vpop.f32.mrf.mxu0
        %v1143 = vadd.f32 %v804, %v1142
        %1144 = vmatmul.f32.gmra.mxu0 %v424
        %v1145 = vpop.f32.mrf.mxu0
        %v1146 = vadd.f32 %v807, %v1145
        %1147 = vmatmul.f32.gmra.mxu0 %v425
        %v1148 = vpop.f32.mrf.mxu0
        %v1149 = vadd.f32 %v810, %v1148
        %1150 = vdwg.mxu0
        %1151 = vmatpush.msra.mxu0 %v521
        %1152 = vmatpush.msra.mxu0 %v519
        %1153 = vmatpush.msra.mxu0 %v517
        %1154 = vmatpush.msra.mxu0 %v515
        %1155 = vmatpush.msra.mxu0 %v513
        %1156 = vmatpush.msra.mxu0 %v511
        %1157 = vmatpush.msra.mxu0 %v509
        %1158 = vmatpush.msra.mxu0 %v507
        %1159 = vmatpush.msra.mxu0 %v505
        %1160 = vmatpush.msra.mxu0 %v503
        %1161 = vmatpush.msra.mxu0 %v501
        %1162 = vmatpush.msra.mxu0 %v499
        %1163 = vmatpush.msra.mxu0 %v497
        %1164 = vmatpush.msra.mxu0 %v495
        %1165 = vmatpush.msra.mxu0 %v493
        %1166 = vmatpush.msra.mxu0 %v491
        %1167 = vmatmul.f32.gmra.mxu0 %v394
        %v1168 = vpop.f32.mrf.mxu0
        %v1169 = vadd.f32 %v943, %v1168
        %1170 = vmatmul.f32.gmra.mxu0 %v395
        %v1171 = vpop.f32.mrf.mxu0
        %v1172 = vadd.f32 %v946, %v1171
        %1173 = vmatmul.f32.gmra.mxu0 %v396
        %v1174 = vpop.f32.mrf.mxu0
        %v1175 = vadd.f32 %v949, %v1174
        %1176 = vmatmul.f32.gmra.mxu0 %v397
        %v1177 = vpop.f32.mrf.mxu0
        %v1178 = vadd.f32 %v952, %v1177
        %1179 = vmatmul.f32.gmra.mxu0 %v398
        %v1180 = vpop.f32.mrf.mxu0
        %v1181 = vadd.f32 %v955, %v1180
        %1182 = vmatmul.f32.gmra.mxu0 %v399
        %v1183 = vpop.f32.mrf.mxu0
        %v1184 = vadd.f32 %v958, %v1183
        %1185 = vmatmul.f32.gmra.mxu0 %v400
        %v1186 = vpop.f32.mrf.mxu0
        %v1187 = vadd.f32 %v961, %v1186
        %1188 = vmatmul.f32.gmra.mxu0 %v401
        %v1189 = vpop.f32.mrf.mxu0
        %v1190 = vadd.f32 %v964, %v1189
        %1191 = vmatmul.f32.gmra.mxu0 %v402
        %v1192 = vpop.f32.mrf.mxu0
        %v1193 = vadd.f32 %v967, %v1192
        %1194 = vmatmul.f32.gmra.mxu0 %v403
        %v1195 = vpop.f32.mrf.mxu0
        %v1196 = vadd.f32 %v970, %v1195
        %1197 = vmatmul.f32.gmra.mxu0 %v404
        %v1198 = vpop.f32.mrf.mxu0
        %v1199 = vadd.f32 %v973, %v1198
        %1200 = vmatmul.f32.gmra.mxu0 %v405
        %v1201 = vpop.f32.mrf.mxu0
        %v1202 = vadd.f32 %v976, %v1201
        %1203 = vmatmul.f32.gmra.mxu0 %v406
        %v1204 = vpop.f32.mrf.mxu0
        %v1205 = vadd.f32 %v979, %v1204
        %1206 = vmatmul.f32.gmra.mxu0 %v407
        %v1207 = vpop.f32.mrf.mxu0
        %v1208 = vadd.f32 %v982, %v1207
        %1209 = vmatmul.f32.gmra.mxu0 %v408
        %v1210 = vpop.f32.mrf.mxu0
        %v1211 = vadd.f32 %v985, %v1210
        %1212 = vmatmul.f32.gmra.mxu0 %v409
        %v1213 = vpop.f32.mrf.mxu0
        %v1214 = vadd.f32 %v988, %v1213
        %1215 = vmatmul.f32.gmra.mxu0 %v410
        %v1216 = vpop.f32.mrf.mxu0
        %v1217 = vadd.f32 %v991, %v1216
        %1218 = vmatmul.f32.gmra.mxu0 %v411
        %v1219 = vpop.f32.mrf.mxu0
        %v1220 = vadd.f32 %v994, %v1219
        %1221 = vmatmul.f32.gmra.mxu0 %v412
        %v1222 = vpop.f32.mrf.mxu0
        %v1223 = vadd.f32 %v997, %v1222
        %1224 = vmatmul.f32.gmra.mxu0 %v413
        %v1225 = vpop.f32.mrf.mxu0
        %v1226 = vadd.f32 %v1000, %v1225
        %1227 = vmatmul.f32.gmra.mxu0 %v414
        %v1228 = vpop.f32.mrf.mxu0
        %v1229 = vadd.f32 %v1003, %v1228
        %1230 = vmatmul.f32.gmra.mxu0 %v415
        %v1231 = vpop.f32.mrf.mxu0
        %v1232 = vadd.f32 %v1006, %v1231
        %1233 = vmatmul.f32.gmra.mxu0 %v416
        %v1234 = vpop.f32.mrf.mxu0
        %v1235 = vadd.f32 %v1009, %v1234
        %1236 = vmatmul.f32.gmra.mxu0 %v417
        %v1237 = vpop.f32.mrf.mxu0
        %v1238 = vadd.f32 %v1012, %v1237
        %1239 = vmatmul.f32.gmra.mxu0 %v418
        %v1240 = vpop.f32.mrf.mxu0
        %v1241 = vadd.f32 %v1015, %v1240
        %1242 = vmatmul.f32.gmra.mxu0 %v419
        %v1243 = vpop.f32.mrf.mxu0
        %v1244 = vadd.f32 %v1018, %v1243
        %1245 = vmatmul.f32.gmra.mxu0 %v420
        %v1246 = vpop.f32.mrf.mxu0
        %v1247 = vadd.f32 %v1021, %v1246
        %1248 = vmatmul.f32.gmra.mxu0 %v421
        %v1249 = vpop.f32.mrf.mxu0
        %v1250 = vadd.f32 %v1024, %v1249
        %1251 = vmatmul.f32.gmra.mxu0 %v422
        %v1252 = vpop.f32.mrf.mxu0
        %v1253 = vadd.f32 %v1027, %v1252
        %1254 = vmatmul.f32.gmra.mxu0 %v423
        %v1255 = vpop.f32.mrf.mxu0
        %v1256 = vadd.f32 %v1030, %v1255
        %1257 = vmatmul.f32.gmra.mxu0 %v424
        %v1258 = vpop.f32.mrf.mxu0
        %v1259 = vadd.f32 %v1033, %v1258
        %1260 = vmatmul.f32.gmra.mxu0 %v425
        %v1261 = vpop.f32.mrf.mxu0
        %v1262 = vadd.f32 %v1036, %v1261
        %1263 = vdwg.mxu0
        %v1264 = vld [vmem:[%s4] sm:$0x3]
        %v1266 = vperm.slane %v1264, 0
        %v1267 = vperm.slane %v1264, 1
        %v1270 = vadd.f32 %v1056, %v1266
        %v1271 = vadd.f32 %v1169, %v1267
        %v1272 = vadd.f32 %v1059, %v1266
        %v1273 = vadd.f32 %v1172, %v1267
        %v1274 = vadd.f32 %v1062, %v1266
        %v1275 = vadd.f32 %v1175, %v1267
        %v1276 = vadd.f32 %v1065, %v1266
        %v1277 = vadd.f32 %v1178, %v1267
        %v1278 = vadd.f32 %v1068, %v1266
        %v1279 = vadd.f32 %v1181, %v1267
        %v1280 = vadd.f32 %v1071, %v1266
        %v1281 = vadd.f32 %v1184, %v1267
        %v1282 = vadd.f32 %v1074, %v1266
        %v1283 = vadd.f32 %v1187, %v1267
        %v1284 = vadd.f32 %v1077, %v1266
        %v1285 = vadd.f32 %v1190, %v1267
        %v1286 = vadd.f32 %v1080, %v1266
        %v1287 = vadd.f32 %v1193, %v1267
        %v1288 = vadd.f32 %v1083, %v1266
        %v1289 = vadd.f32 %v1196, %v1267
        %v1290 = vadd.f32 %v1086, %v1266
        %v1291 = vadd.f32 %v1199, %v1267
        %v1292 = vadd.f32 %v1089, %v1266
        %v1293 = vadd.f32 %v1202, %v1267
        %v1294 = vadd.f32 %v1092, %v1266
        %v1295 = vadd.f32 %v1205, %v1267
        %v1296 = vadd.f32 %v1095, %v1266
        %v1297 = vadd.f32 %v1208, %v1267
        %v1298 = vadd.f32 %v1098, %v1266
        %v1299 = vadd.f32 %v1211, %v1267
        %v1300 = vadd.f32 %v1101, %v1266
        %v1301 = vadd.f32 %v1214, %v1267
        %v1302 = vadd.f32 %v1104, %v1266
        %v1303 = vadd.f32 %v1217, %v1267
        %v1304 = vadd.f32 %v1107, %v1266
        %v1305 = vadd.f32 %v1220, %v1267
        %v1306 = vadd.f32 %v1110, %v1266
        %v1307 = vadd.f32 %v1223, %v1267
        %v1308 = vadd.f32 %v1113, %v1266
        %v1309 = vadd.f32 %v1226, %v1267
        %v1310 = vadd.f32 %v1116, %v1266
        %v1311 = vadd.f32 %v1229, %v1267
        %v1312 = vadd.f32 %v1119, %v1266
        %v1313 = vadd.f32 %v1232, %v1267
        %v1314 = vadd.f32 %v1122, %v1266
        %v1315 = vadd.f32 %v1235, %v1267
        %v1316 = vadd.f32 %v1125, %v1266
        %v1317 = vadd.f32 %v1238, %v1267
        %v1318 = vadd.f32 %v1128, %v1266
        %v1319 = vadd.f32 %v1241, %v1267
        %v1320 = vadd.f32 %v1131, %v1266
        %v1321 = vadd.f32 %v1244, %v1267
        %v1322 = vadd.f32 %v1134, %v1266
        %v1323 = vadd.f32 %v1247, %v1267
        %v1324 = vadd.f32 %v1137, %v1266
        %v1325 = vadd.f32 %v1250, %v1267
        %v1326 = vadd.f32 %v1140, %v1266
        %v1327 = vadd.f32 %v1253, %v1267
        %v1328 = vadd.f32 %v1143, %v1266
        %v1329 = vadd.f32 %v1256, %v1267
        %v1330 = vadd.f32 %v1146, %v1266
        %v1331 = vadd.f32 %v1259, %v1267
        %v1332 = vadd.f32 %v1149, %v1266
        %v1333 = vadd.f32 %v1262, %v1267
        %v1334 = vmax.f32 %v1270, 0.0
        %v1335 = vmax.f32 %v1271, 0.0
        %v1336 = vmax.f32 %v1272, 0.0
        %v1337 = vmax.f32 %v1273, 0.0
        %v1338 = vmax.f32 %v1274, 0.0
        %v1339 = vmax.f32 %v1275, 0.0
        %v1340 = vmax.f32 %v1276, 0.0
        %v1341 = vmax.f32 %v1277, 0.0
        %v1342 = vmax.f32 %v1278, 0.0
        %v1343 = vmax.f32 %v1279, 0.0
        %v1344 = vmax.f32 %v1280, 0.0
        %v1345 = vmax.f32 %v1281, 0.0
        %v1346 = vmax.f32 %v1282, 0.0
        %v1347 = vmax.f32 %v1283, 0.0
        %v1348 = vmax.f32 %v1284, 0.0
        %v1349 = vmax.f32 %v1285, 0.0
        %v1350 = vmax.f32 %v1286, 0.0
        %v1351 = vmax.f32 %v1287, 0.0
        %v1352 = vmax.f32 %v1288, 0.0
        %v1353 = vmax.f32 %v1289, 0.0
        %v1354 = vmax.f32 %v1290, 0.0
        %v1355 = vmax.f32 %v1291, 0.0
        %v1356 = vmax.f32 %v1292, 0.0
        %v1357 = vmax.f32 %v1293, 0.0
        %v1358 = vmax.f32 %v1294, 0.0
        %v1359 = vmax.f32 %v1295, 0.0
        %v1360 = vmax.f32 %v1296, 0.0
        %v1361 = vmax.f32 %v1297, 0.0
        %v1362 = vmax.f32 %v1298, 0.0
        %v1363 = vmax.f32 %v1299, 0.0
        %v1364 = vmax.f32 %v1300, 0.0
        %v1365 = vmax.f32 %v1301, 0.0
        %v1366 = vmax.f32 %v1302, 0.0
        %v1367 = vmax.f32 %v1303, 0.0
        %v1368 = vmax.f32 %v1304, 0.0
        %v1369 = vmax.f32 %v1305, 0.0
        %v1370 = vmax.f32 %v1306, 0.0
        %v1371 = vmax.f32 %v1307, 0.0
        %v1372 = vmax.f32 %v1308, 0.0
        %v1373 = vmax.f32 %v1309, 0.0
        %v1374 = vmax.f32 %v1310, 0.0
        %v1375 = vmax.f32 %v1311, 0.0
        %v1376 = vmax.f32 %v1312, 0.0
        %v1377 = vmax.f32 %v1313, 0.0
        %v1378 = vmax.f32 %v1314, 0.0
        %v1379 = vmax.f32 %v1315, 0.0
        %v1380 = vmax.f32 %v1316, 0.0
        %v1381 = vmax.f32 %v1317, 0.0
        %v1382 = vmax.f32 %v1318, 0.0
        %v1383 = vmax.f32 %v1319, 0.0
        %v1384 = vmax.f32 %v1320, 0.0
        %v1385 = vmax.f32 %v1321, 0.0
        %v1386 = vmax.f32 %v1322, 0.0
        %v1387 = vmax.f32 %v1323, 0.0
        %v1388 = vmax.f32 %v1324, 0.0
        %v1389 = vmax.f32 %v1325, 0.0
        %v1390 = vmax.f32 %v1326, 0.0
        %v1391 = vmax.f32 %v1327, 0.0
        %v1392 = vmax.f32 %v1328, 0.0
        %v1393 = vmax.f32 %v1329, 0.0
        %v1394 = vmax.f32 %v1330, 0.0
        %v1395 = vmax.f32 %v1331, 0.0
        %v1396 = vmax.f32 %v1332, 0.0
        %v1397 = vmax.f32 %v1333, 0.0
        %v1398 = vld [vmem:[#allocation10] sm:$0xff]
        %v1399 = vld [vmem:[#allocation10 + $0x8] sm:$0xff]
        %v1400 = vld [vmem:[#allocation10 + $0x10] sm:$0xff]
        %v1401 = vld [vmem:[#allocation10 + $0x18] sm:$0xff]
        %v1402 = vld [vmem:[#allocation10 + $0x20] sm:$0xff]
        %v1403 = vld [vmem:[#allocation10 + $0x28] sm:$0xff]
        %v1404 = vld [vmem:[#allocation10 + $0x30] sm:$0xff]
        %v1405 = vld [vmem:[#allocation10 + $0x38] sm:$0xff]
        %v1406 = vld [vmem:[#allocation10 + $0x40] sm:$0xff]
        %v1407 = vld [vmem:[#allocation10 + $0x48] sm:$0xff]
        %v1408 = vld [vmem:[#allocation10 + $0x50] sm:$0xff]
        %v1409 = vld [vmem:[#allocation10 + $0x58] sm:$0xff]
        %v1410 = vld [vmem:[#allocation10 + $0x60] sm:$0xff]
        %v1411 = vld [vmem:[#allocation10 + $0x68] sm:$0xff]
        %v1412 = vld [vmem:[#allocation10 + $0x70] sm:$0xff]
        %v1413 = vld [vmem:[#allocation10 + $0x78] sm:$0xff]
        %v1414 = vld [vmem:[#allocation10 + $0x80] sm:$0xff]
        %v1415 = vld [vmem:[#allocation10 + $0x88] sm:$0xff]
        %v1416 = vld [vmem:[#allocation10 + $0x90] sm:$0xff]
        %v1417 = vld [vmem:[#allocation10 + $0x98] sm:$0xff]
        %v1418 = vld [vmem:[#allocation10 + $0xa0] sm:$0xff]
        %v1419 = vld [vmem:[#allocation10 + $0xa8] sm:$0xff]
        %v1420 = vld [vmem:[#allocation10 + $0xb0] sm:$0xff]
        %v1421 = vld [vmem:[#allocation10 + $0xb8] sm:$0xff]
        %v1422 = vld [vmem:[#allocation10 + $0xc0] sm:$0xff]
        %v1423 = vld [vmem:[#allocation10 + $0xc8] sm:$0xff]
        %v1424 = vld [vmem:[#allocation10 + $0xd0] sm:$0xff]
        %v1425 = vld [vmem:[#allocation10 + $0xd8] sm:$0xff]
        %v1426 = vld [vmem:[#allocation10 + $0xe0] sm:$0xff]
        %v1427 = vld [vmem:[#allocation10 + $0xe8] sm:$0xff]
        %v1428 = vld [vmem:[#allocation10 + $0xf0] sm:$0xff]
        %v1429 = vld [vmem:[#allocation10 + $0xf8] sm:$0xff]
        %v1430 = vld [vmem:[#allocation10 + $0x100] sm:$0xff]
        %v1431 = vld [vmem:[#allocation10 + $0x108] sm:$0xff]
        %v1432 = vld [vmem:[#allocation10 + $0x110] sm:$0xff]
        %v1433 = vld [vmem:[#allocation10 + $0x118] sm:$0xff]
        %v1434 = vld [vmem:[#allocation10 + $0x120] sm:$0xff]
        %v1435 = vld [vmem:[#allocation10 + $0x128] sm:$0xff]
        %v1436 = vld [vmem:[#allocation10 + $0x130] sm:$0xff]
        %v1437 = vld [vmem:[#allocation10 + $0x138] sm:$0xff]
        %v1438 = vld [vmem:[#allocation10 + $0x140] sm:$0xff]
        %v1439 = vld [vmem:[#allocation10 + $0x148] sm:$0xff]
        %v1440 = vld [vmem:[#allocation10 + $0x150] sm:$0xff]
        %v1441 = vld [vmem:[#allocation10 + $0x158] sm:$0xff]
        %v1442 = vld [vmem:[#allocation10 + $0x160] sm:$0xff]
        %v1443 = vld [vmem:[#allocation10 + $0x168] sm:$0xff]
        %v1444 = vld [vmem:[#allocation10 + $0x170] sm:$0xff]
        %v1445 = vld [vmem:[#allocation10 + $0x178] sm:$0xff]
        %v1446 = vld [vmem:[#allocation10 + $0x180] sm:$0xff]
        %v1447 = vld [vmem:[#allocation10 + $0x188] sm:$0xff]
        %v1448 = vld [vmem:[#allocation10 + $0x190] sm:$0xff]
        %v1449 = vld [vmem:[#allocation10 + $0x198] sm:$0xff]
        %v1450 = vld [vmem:[#allocation10 + $0x1a0] sm:$0xff]
        %v1451 = vld [vmem:[#allocation10 + $0x1a8] sm:$0xff]
        %v1452 = vld [vmem:[#allocation10 + $0x1b0] sm:$0xff]
        %v1453 = vld [vmem:[#allocation10 + $0x1b8] sm:$0xff]
        %v1454 = vld [vmem:[#allocation10 + $0x1c0] sm:$0xff]
        %v1455 = vld [vmem:[#allocation10 + $0x1c8] sm:$0xff]
        %v1456 = vld [vmem:[#allocation10 + $0x1d0] sm:$0xff]
        %v1457 = vld [vmem:[#allocation10 + $0x1d8] sm:$0xff]
        %v1458 = vld [vmem:[#allocation10 + $0x1e0] sm:$0xff]
        %v1459 = vld [vmem:[#allocation10 + $0x1e8] sm:$0xff]
        %v1460 = vld [vmem:[#allocation10 + $0x1f0] sm:$0xff]
        %v1461 = vld [vmem:[#allocation10 + $0x1f8] sm:$0xff]
        %v1462 = vld [vmem:[%s6] sm:$0x3]
        %v1464 = vperm.slane %v1462, 0
        %v1465 = vperm.slane %v1462, 1
        %1468 = vmatpush.msra.mxu0 %v1428
        %1469 = vmatpush.msra.mxu0 %v1426
        %1470 = vmatpush.msra.mxu0 %v1424
        %1471 = vmatpush.msra.mxu0 %v1422
        %1472 = vmatpush.msra.mxu0 %v1420
        %1473 = vmatpush.msra.mxu0 %v1418
        %1474 = vmatpush.msra.mxu0 %v1416
        %1475 = vmatpush.msra.mxu0 %v1414
        %1476 = vmatpush.msra.mxu0 %v1412
        %1477 = vmatpush.msra.mxu0 %v1410
        %1478 = vmatpush.msra.mxu0 %v1408
        %1479 = vmatpush.msra.mxu0 %v1406
        %1480 = vmatpush.msra.mxu0 %v1404
        %1481 = vmatpush.msra.mxu0 %v1402
        %1482 = vmatpush.msra.mxu0 %v1400
        %1483 = vmatpush.msra.mxu0 %v1398
        %1484 = vmatmul.f32.gmra.mxu0 %v1334
        %v1485 = vpop.f32.mrf.mxu0
        %v1486 = vadd.f32 %v1464, %v1485
        %1487 = vmatmul.f32.gmra.mxu0 %v1336
        %v1488 = vpop.f32.mrf.mxu0
        %v1489 = vadd.f32 %v1464, %v1488
        %1490 = vmatmul.f32.gmra.mxu0 %v1338
        %v1491 = vpop.f32.mrf.mxu0
        %v1492 = vadd.f32 %v1464, %v1491
        %1493 = vmatmul.f32.gmra.mxu0 %v1340
        %v1494 = vpop.f32.mrf.mxu0
        %v1495 = vadd.f32 %v1464, %v1494
        %1496 = vmatmul.f32.gmra.mxu0 %v1342
        %v1497 = vpop.f32.mrf.mxu0
        %v1498 = vadd.f32 %v1464, %v1497
        %1499 = vmatmul.f32.gmra.mxu0 %v1344
        %v1500 = vpop.f32.mrf.mxu0
        %v1501 = vadd.f32 %v1464, %v1500
        %1502 = vmatmul.f32.gmra.mxu0 %v1346
        %v1503 = vpop.f32.mrf.mxu0
        %v1504 = vadd.f32 %v1464, %v1503
        %1505 = vmatmul.f32.gmra.mxu0 %v1348
        %v1506 = vpop.f32.mrf.mxu0
        %v1507 = vadd.f32 %v1464, %v1506
        %1508 = vmatmul.f32.gmra.mxu0 %v1350
        %v1509 = vpop.f32.mrf.mxu0
        %v1510 = vadd.f32 %v1464, %v1509
        %1511 = vmatmul.f32.gmra.mxu0 %v1352
        %v1512 = vpop.f32.mrf.mxu0
        %v1513 = vadd.f32 %v1464, %v1512
        %1514 = vmatmul.f32.gmra.mxu0 %v1354
        %v1515 = vpop.f32.mrf.mxu0
        %v1516 = vadd.f32 %v1464, %v1515
        %1517 = vmatmul.f32.gmra.mxu0 %v1356
        %v1518 = vpop.f32.mrf.mxu0
        %v1519 = vadd.f32 %v1464, %v1518
        %1520 = vmatmul.f32.gmra.mxu0 %v1358
        %v1521 = vpop.f32.mrf.mxu0
        %v1522 = vadd.f32 %v1464, %v1521
        %1523 = vmatmul.f32.gmra.mxu0 %v1360
        %v1524 = vpop.f32.mrf.mxu0
        %v1525 = vadd.f32 %v1464, %v1524
        %1526 = vmatmul.f32.gmra.mxu0 %v1362
        %v1527 = vpop.f32.mrf.mxu0
        %v1528 = vadd.f32 %v1464, %v1527
        %1529 = vmatmul.f32.gmra.mxu0 %v1364
        %v1530 = vpop.f32.mrf.mxu0
        %v1531 = vadd.f32 %v1464, %v1530
        %1532 = vmatmul.f32.gmra.mxu0 %v1366
        %v1533 = vpop.f32.mrf.mxu0
        %v1534 = vadd.f32 %v1464, %v1533
        %1535 = vmatmul.f32.gmra.mxu0 %v1368
        %v1536 = vpop.f32.mrf.mxu0
        %v1537 = vadd.f32 %v1464, %v1536
        %1538 = vmatmul.f32.gmra.mxu0 %v1370
        %v1539 = vpop.f32.mrf.mxu0
        %v1540 = vadd.f32 %v1464, %v1539
        %1541 = vmatmul.f32.gmra.mxu0 %v1372
        %v1542 = vpop.f32.mrf.mxu0
        %v1543 = vadd.f32 %v1464, %v1542
        %1544 = vmatmul.f32.gmra.mxu0 %v1374
        %v1545 = vpop.f32.mrf.mxu0
        %v1546 = vadd.f32 %v1464, %v1545
        %1547 = vmatmul.f32.gmra.mxu0 %v1376
        %v1548 = vpop.f32.mrf.mxu0
        %v1549 = vadd.f32 %v1464, %v1548
        %1550 = vmatmul.f32.gmra.mxu0 %v1378
        %v1551 = vpop.f32.mrf.mxu0
        %v1552 = vadd.f32 %v1464, %v1551
        %1553 = vmatmul.f32.gmra.mxu0 %v1380
        %v1554 = vpop.f32.mrf.mxu0
        %v1555 = vadd.f32 %v1464, %v1554
        %1556 = vmatmul.f32.gmra.mxu0 %v1382
        %v1557 = vpop.f32.mrf.mxu0
        %v1558 = vadd.f32 %v1464, %v1557
        %1559 = vmatmul.f32.gmra.mxu0 %v1384
        %v1560 = vpop.f32.mrf.mxu0
        %v1561 = vadd.f32 %v1464, %v1560
        %1562 = vmatmul.f32.gmra.mxu0 %v1386
        %v1563 = vpop.f32.mrf.mxu0
        %v1564 = vadd.f32 %v1464, %v1563
        %1565 = vmatmul.f32.gmra.mxu0 %v1388
        %v1566 = vpop.f32.mrf.mxu0
        %v1567 = vadd.f32 %v1464, %v1566
        %1568 = vmatmul.f32.gmra.mxu0 %v1390
        %v1569 = vpop.f32.mrf.mxu0
        %v1570 = vadd.f32 %v1464, %v1569
        %1571 = vmatmul.f32.gmra.mxu0 %v1392
        %v1572 = vpop.f32.mrf.mxu0
        %v1573 = vadd.f32 %v1464, %v1572
        %1574 = vmatmul.f32.gmra.mxu0 %v1394
        %v1575 = vpop.f32.mrf.mxu0
        %v1576 = vadd.f32 %v1464, %v1575
        %1577 = vmatmul.f32.gmra.mxu0 %v1396
        %v1578 = vpop.f32.mrf.mxu0
        %v1579 = vadd.f32 %v1464, %v1578
        %1580 = vdwg.mxu0
        %1581 = vmatpush.msra.mxu0 %v1460
        %1582 = vmatpush.msra.mxu0 %v1458
        %1583 = vmatpush.msra.mxu0 %v1456
        %1584 = vmatpush.msra.mxu0 %v1454
        %1585 = vmatpush.msra.mxu0 %v1452
        %1586 = vmatpush.msra.mxu0 %v1450
        %1587 = vmatpush.msra.mxu0 %v1448
        %1588 = vmatpush.msra.mxu0 %v1446
        %1589 = vmatpush.msra.mxu0 %v1444
        %1590 = vmatpush.msra.mxu0 %v1442
        %1591 = vmatpush.msra.mxu0 %v1440
        %1592 = vmatpush.msra.mxu0 %v1438
        %1593 = vmatpush.msra.mxu0 %v1436
        %1594 = vmatpush.msra.mxu0 %v1434
        %1595 = vmatpush.msra.mxu0 %v1432
        %1596 = vmatpush.msra.mxu0 %v1430
        %1597 = vmatmul.f32.gmra.mxu0 %v1335
        %v1598 = vpop.f32.mrf.mxu0
        %v1599 = vadd.f32 %v1486, %v1598
        %1600 = vmatmul.f32.gmra.mxu0 %v1337
        %v1601 = vpop.f32.mrf.mxu0
        %v1602 = vadd.f32 %v1489, %v1601
        %1603 = vmatmul.f32.gmra.mxu0 %v1339
        %v1604 = vpop.f32.mrf.mxu0
        %v1605 = vadd.f32 %v1492, %v1604
        %1606 = vmatmul.f32.gmra.mxu0 %v1341
        %v1607 = vpop.f32.mrf.mxu0
        %v1608 = vadd.f32 %v1495, %v1607
        %1609 = vmatmul.f32.gmra.mxu0 %v1343
        %v1610 = vpop.f32.mrf.mxu0
        %v1611 = vadd.f32 %v1498, %v1610
        %1612 = vmatmul.f32.gmra.mxu0 %v1345
        %v1613 = vpop.f32.mrf.mxu0
        %v1614 = vadd.f32 %v1501, %v1613
        %1615 = vmatmul.f32.gmra.mxu0 %v1347
        %v1616 = vpop.f32.mrf.mxu0
        %v1617 = vadd.f32 %v1504, %v1616
        %1618 = vmatmul.f32.gmra.mxu0 %v1349
        %v1619 = vpop.f32.mrf.mxu0
        %v1620 = vadd.f32 %v1507, %v1619
        %1621 = vmatmul.f32.gmra.mxu0 %v1351
        %v1622 = vpop.f32.mrf.mxu0
        %v1623 = vadd.f32 %v1510, %v1622
        %1624 = vmatmul.f32.gmra.mxu0 %v1353
        %v1625 = vpop.f32.mrf.mxu0
        %v1626 = vadd.f32 %v1513, %v1625
        %1627 = vmatmul.f32.gmra.mxu0 %v1355
        %v1628 = vpop.f32.mrf.mxu0
        %v1629 = vadd.f32 %v1516, %v1628
        %1630 = vmatmul.f32.gmra.mxu0 %v1357
        %v1631 = vpop.f32.mrf.mxu0
        %v1632 = vadd.f32 %v1519, %v1631
        %1633 = vmatmul.f32.gmra.mxu0 %v1359
        %v1634 = vpop.f32.mrf.mxu0
        %v1635 = vadd.f32 %v1522, %v1634
        %1636 = vmatmul.f32.gmra.mxu0 %v1361
        %v1637 = vpop.f32.mrf.mxu0
        %v1638 = vadd.f32 %v1525, %v1637
        %1639 = vmatmul.f32.gmra.mxu0 %v1363
        %v1640 = vpop.f32.mrf.mxu0
        %v1641 = vadd.f32 %v1528, %v1640
        %1642 = vmatmul.f32.gmra.mxu0 %v1365
        %v1643 = vpop.f32.mrf.mxu0
        %v1644 = vadd.f32 %v1531, %v1643
        %1645 = vmatmul.f32.gmra.mxu0 %v1367
        %v1646 = vpop.f32.mrf.mxu0
        %v1647 = vadd.f32 %v1534, %v1646
        %1648 = vmatmul.f32.gmra.mxu0 %v1369
        %v1649 = vpop.f32.mrf.mxu0
        %v1650 = vadd.f32 %v1537, %v1649
        %1651 = vmatmul.f32.gmra.mxu0 %v1371
        %v1652 = vpop.f32.mrf.mxu0
        %v1653 = vadd.f32 %v1540, %v1652
        %1654 = vmatmul.f32.gmra.mxu0 %v1373
        %v1655 = vpop.f32.mrf.mxu0
        %v1656 = vadd.f32 %v1543, %v1655
        %1657 = vmatmul.f32.gmra.mxu0 %v1375
        %v1658 = vpop.f32.mrf.mxu0
        %v1659 = vadd.f32 %v1546, %v1658
        %1660 = vmatmul.f32.gmra.mxu0 %v1377
        %v1661 = vpop.f32.mrf.mxu0
        %v1662 = vadd.f32 %v1549, %v1661
        %1663 = vmatmul.f32.gmra.mxu0 %v1379
        %v1664 = vpop.f32.mrf.mxu0
        %v1665 = vadd.f32 %v1552, %v1664
        %1666 = vmatmul.f32.gmra.mxu0 %v1381
        %v1667 = vpop.f32.mrf.mxu0
        %v1668 = vadd.f32 %v1555, %v1667
        %1669 = vmatmul.f32.gmra.mxu0 %v1383
        %v1670 = vpop.f32.mrf.mxu0
        %v1671 = vadd.f32 %v1558, %v1670
        %1672 = vmatmul.f32.gmra.mxu0 %v1385
        %v1673 = vpop.f32.mrf.mxu0
        %v1674 = vadd.f32 %v1561, %v1673
        %1675 = vmatmul.f32.gmra.mxu0 %v1387
        %v1676 = vpop.f32.mrf.mxu0
        %v1677 = vadd.f32 %v1564, %v1676
        %1678 = vmatmul.f32.gmra.mxu0 %v1389
        %v1679 = vpop.f32.mrf.mxu0
        %v1680 = vadd.f32 %v1567, %v1679
        %1681 = vmatmul.f32.gmra.mxu0 %v1391
        %v1682 = vpop.f32.mrf.mxu0
        %v1683 = vadd.f32 %v1570, %v1682
        %1684 = vmatmul.f32.gmra.mxu0 %v1393
        %v1685 = vpop.f32.mrf.mxu0
        %v1686 = vadd.f32 %v1573, %v1685
        %1687 = vmatmul.f32.gmra.mxu0 %v1395
        %v1688 = vpop.f32.mrf.mxu0
        %v1689 = vadd.f32 %v1576, %v1688
        %1690 = vmatmul.f32.gmra.mxu0 %v1397
        %v1691 = vpop.f32.mrf.mxu0
        %v1692 = vadd.f32 %v1579, %v1691
        %1693 = vdwg.mxu0
        %1694 = vmatpush.msra.mxu0 %v1429
        %1695 = vmatpush.msra.mxu0 %v1427
        %1696 = vmatpush.msra.mxu0 %v1425
        %1697 = vmatpush.msra.mxu0 %v1423
        %1698 = vmatpush.msra.mxu0 %v1421
        %1699 = vmatpush.msra.mxu0 %v1419
        %1700 = vmatpush.msra.mxu0 %v1417
        %1701 = vmatpush.msra.mxu0 %v1415
        %1702 = vmatpush.msra.mxu0 %v1413
        %1703 = vmatpush.msra.mxu0 %v1411
        %1704 = vmatpush.msra.mxu0 %v1409
        %1705 = vmatpush.msra.mxu0 %v1407
        %1706 = vmatpush.msra.mxu0 %v1405
        %1707 = vmatpush.msra.mxu0 %v1403
        %1708 = vmatpush.msra.mxu0 %v1401
        %1709 = vmatpush.msra.mxu0 %v1399
        %1710 = vmatmul.f32.gmra.mxu0 %v1334
        %v1711 = vpop.f32.mrf.mxu0
        %v1712 = vadd.f32 %v1465, %v1711
        %1713 = vmatmul.f32.gmra.mxu0 %v1336
        %v1714 = vpop.f32.mrf.mxu0
        %v1715 = vadd.f32 %v1465, %v1714
        %1716 = vmatmul.f32.gmra.mxu0 %v1338
        %v1717 = vpop.f32.mrf.mxu0
        %v1718 = vadd.f32 %v1465, %v1717
        %1719 = vmatmul.f32.gmra.mxu0 %v1340
        %v1720 = vpop.f32.mrf.mxu0
        %v1721 = vadd.f32 %v1465, %v1720
        %1722 = vmatmul.f32.gmra.mxu0 %v1342
        %v1723 = vpop.f32.mrf.mxu0
        %v1724 = vadd.f32 %v1465, %v1723
        %1725 = vmatmul.f32.gmra.mxu0 %v1344
        %v1726 = vpop.f32.mrf.mxu0
        %v1727 = vadd.f32 %v1465, %v1726
        %1728 = vmatmul.f32.gmra.mxu0 %v1346
        %v1729 = vpop.f32.mrf.mxu0
        %v1730 = vadd.f32 %v1465, %v1729
        %1731 = vmatmul.f32.gmra.mxu0 %v1348
        %v1732 = vpop.f32.mrf.mxu0
        %v1733 = vadd.f32 %v1465, %v1732
        %1734 = vmatmul.f32.gmra.mxu0 %v1350
        %v1735 = vpop.f32.mrf.mxu0
        %v1736 = vadd.f32 %v1465, %v1735
        %1737 = vmatmul.f32.gmra.mxu0 %v1352
        %v1738 = vpop.f32.mrf.mxu0
        %v1739 = vadd.f32 %v1465, %v1738
        %1740 = vmatmul.f32.gmra.mxu0 %v1354
        %v1741 = vpop.f32.mrf.mxu0
        %v1742 = vadd.f32 %v1465, %v1741
        %1743 = vmatmul.f32.gmra.mxu0 %v1356
        %v1744 = vpop.f32.mrf.mxu0
        %v1745 = vadd.f32 %v1465, %v1744
        %1746 = vmatmul.f32.gmra.mxu0 %v1358
        %v1747 = vpop.f32.mrf.mxu0
        %v1748 = vadd.f32 %v1465, %v1747
        %1749 = vmatmul.f32.gmra.mxu0 %v1360
        %v1750 = vpop.f32.mrf.mxu0
        %v1751 = vadd.f32 %v1465, %v1750
        %1752 = vmatmul.f32.gmra.mxu0 %v1362
        %v1753 = vpop.f32.mrf.mxu0
        %v1754 = vadd.f32 %v1465, %v1753
        %1755 = vmatmul.f32.gmra.mxu0 %v1364
        %v1756 = vpop.f32.mrf.mxu0
        %v1757 = vadd.f32 %v1465, %v1756
        %1758 = vmatmul.f32.gmra.mxu0 %v1366
        %v1759 = vpop.f32.mrf.mxu0
        %v1760 = vadd.f32 %v1465, %v1759
        %1761 = vmatmul.f32.gmra.mxu0 %v1368
        %v1762 = vpop.f32.mrf.mxu0
        %v1763 = vadd.f32 %v1465, %v1762
        %1764 = vmatmul.f32.gmra.mxu0 %v1370
        %v1765 = vpop.f32.mrf.mxu0
        %v1766 = vadd.f32 %v1465, %v1765
        %1767 = vmatmul.f32.gmra.mxu0 %v1372
        %v1768 = vpop.f32.mrf.mxu0
        %v1769 = vadd.f32 %v1465, %v1768
        %1770 = vmatmul.f32.gmra.mxu0 %v1374
        %v1771 = vpop.f32.mrf.mxu0
        %v1772 = vadd.f32 %v1465, %v1771
        %1773 = vmatmul.f32.gmra.mxu0 %v1376
        %v1774 = vpop.f32.mrf.mxu0
        %v1775 = vadd.f32 %v1465, %v1774
        %1776 = vmatmul.f32.gmra.mxu0 %v1378
        %v1777 = vpop.f32.mrf.mxu0
        %v1778 = vadd.f32 %v1465, %v1777
        %1779 = vmatmul.f32.gmra.mxu0 %v1380
        %v1780 = vpop.f32.mrf.mxu0
        %v1781 = vadd.f32 %v1465, %v1780
        %1782 = vmatmul.f32.gmra.mxu0 %v1382
        %v1783 = vpop.f32.mrf.mxu0
        %v1784 = vadd.f32 %v1465, %v1783
        %1785 = vmatmul.f32.gmra.mxu0 %v1384
        %v1786 = vpop.f32.mrf.mxu0
        %v1787 = vadd.f32 %v1465, %v1786
        %1788 = vmatmul.f32.gmra.mxu0 %v1386
        %v1789 = vpop.f32.mrf.mxu0
        %v1790 = vadd.f32 %v1465, %v1789
        %1791 = vmatmul.f32.gmra.mxu0 %v1388
        %v1792 = vpop.f32.mrf.mxu0
        %v1793 = vadd.f32 %v1465, %v1792
        %1794 = vmatmul.f32.gmra.mxu0 %v1390
        %v1795 = vpop.f32.mrf.mxu0
        %v1796 = vadd.f32 %v1465, %v1795
        %1797 = vmatmul.f32.gmra.mxu0 %v1392
        %v1798 = vpop.f32.mrf.mxu0
        %v1799 = vadd.f32 %v1465, %v1798
        %1800 = vmatmul.f32.gmra.mxu0 %v1394
        %v1801 = vpop.f32.mrf.mxu0
        %v1802 = vadd.f32 %v1465, %v1801
        %1803 = vmatmul.f32.gmra.mxu0 %v1396
        %v1804 = vpop.f32.mrf.mxu0
        %v1805 = vadd.f32 %v1465, %v1804
        %1806 = vdwg.mxu0
        %1807 = vmatpush.msra.mxu0 %v1461
        %1808 = vmatpush.msra.mxu0 %v1459
        %1809 = vmatpush.msra.mxu0 %v1457
        %1810 = vmatpush.msra.mxu0 %v1455
        %1811 = vmatpush.msra.mxu0 %v1453
        %1812 = vmatpush.msra.mxu0 %v1451
        %1813 = vmatpush.msra.mxu0 %v1449
        %1814 = vmatpush.msra.mxu0 %v1447
        %1815 = vmatpush.msra.mxu0 %v1445
        %1816 = vmatpush.msra.mxu0 %v1443
        %1817 = vmatpush.msra.mxu0 %v1441
        %1818 = vmatpush.msra.mxu0 %v1439
        %1819 = vmatpush.msra.mxu0 %v1437
        %1820 = vmatpush.msra.mxu0 %v1435
        %1821 = vmatpush.msra.mxu0 %v1433
        %1822 = vmatpush.msra.mxu0 %v1431
        %1823 = vmatmul.f32.gmra.mxu0 %v1335
        %v1824 = vpop.f32.mrf.mxu0
        %v1825 = vadd.f32 %v1712, %v1824
        %1826 = vmatmul.f32.gmra.mxu0 %v1337
        %v1827 = vpop.f32.mrf.mxu0
        %v1828 = vadd.f32 %v1715, %v1827
        %1829 = vmatmul.f32.gmra.mxu0 %v1339
        %v1830 = vpop.f32.mrf.mxu0
        %v1831 = vadd.f32 %v1718, %v1830
        %1832 = vmatmul.f32.gmra.mxu0 %v1341
        %v1833 = vpop.f32.mrf.mxu0
        %v1834 = vadd.f32 %v1721, %v1833
        %1835 = vmatmul.f32.gmra.mxu0 %v1343
        %v1836 = vpop.f32.mrf.mxu0
        %v1837 = vadd.f32 %v1724, %v1836
        %1838 = vmatmul.f32.gmra.mxu0 %v1345
        %v1839 = vpop.f32.mrf.mxu0
        %v1840 = vadd.f32 %v1727, %v1839
        %1841 = vmatmul.f32.gmra.mxu0 %v1347
        %v1842 = vpop.f32.mrf.mxu0
        %v1843 = vadd.f32 %v1730, %v1842
        %1844 = vmatmul.f32.gmra.mxu0 %v1349
        %v1845 = vpop.f32.mrf.mxu0
        %v1846 = vadd.f32 %v1733, %v1845
        %1847 = vmatmul.f32.gmra.mxu0 %v1351
        %v1848 = vpop.f32.mrf.mxu0
        %v1849 = vadd.f32 %v1736, %v1848
        %1850 = vmatmul.f32.gmra.mxu0 %v1353
        %v1851 = vpop.f32.mrf.mxu0
        %v1852 = vadd.f32 %v1739, %v1851
        %1853 = vmatmul.f32.gmra.mxu0 %v1355
        %v1854 = vpop.f32.mrf.mxu0
        %v1855 = vadd.f32 %v1742, %v1854
        %1856 = vmatmul.f32.gmra.mxu0 %v1357
        %v1857 = vpop.f32.mrf.mxu0
        %v1858 = vadd.f32 %v1745, %v1857
        %1859 = vmatmul.f32.gmra.mxu0 %v1359
        %v1860 = vpop.f32.mrf.mxu0
        %v1861 = vadd.f32 %v1748, %v1860
        %1862 = vmatmul.f32.gmra.mxu0 %v1361
        %v1863 = vpop.f32.mrf.mxu0
        %v1864 = vadd.f32 %v1751, %v1863
        %1865 = vmatmul.f32.gmra.mxu0 %v1363
        %v1866 = vpop.f32.mrf.mxu0
        %v1867 = vadd.f32 %v1754, %v1866
        %1868 = vmatmul.f32.gmra.mxu0 %v1365
        %v1869 = vpop.f32.mrf.mxu0
        %v1870 = vadd.f32 %v1757, %v1869
        %1871 = vmatmul.f32.gmra.mxu0 %v1367
        %v1872 = vpop.f32.mrf.mxu0
        %v1873 = vadd.f32 %v1760, %v1872
        %1874 = vmatmul.f32.gmra.mxu0 %v1369
        %v1875 = vpop.f32.mrf.mxu0
        %v1876 = vadd.f32 %v1763, %v1875
        %1877 = vmatmul.f32.gmra.mxu0 %v1371
        %v1878 = vpop.f32.mrf.mxu0
        %v1879 = vadd.f32 %v1766, %v1878
        %1880 = vmatmul.f32.gmra.mxu0 %v1373
        %v1881 = vpop.f32.mrf.mxu0
        %v1882 = vadd.f32 %v1769, %v1881
        %1883 = vmatmul.f32.gmra.mxu0 %v1375
        %v1884 = vpop.f32.mrf.mxu0
        %v1885 = vadd.f32 %v1772, %v1884
        %1886 = vmatmul.f32.gmra.mxu0 %v1377
        %v1887 = vpop.f32.mrf.mxu0
        %v1888 = vadd.f32 %v1775, %v1887
        %1889 = vmatmul.f32.gmra.mxu0 %v1379
        %v1890 = vpop.f32.mrf.mxu0
        %v1891 = vadd.f32 %v1778, %v1890
        %1892 = vmatmul.f32.gmra.mxu0 %v1381
        %v1893 = vpop.f32.mrf.mxu0
        %v1894 = vadd.f32 %v1781, %v1893
        %1895 = vmatmul.f32.gmra.mxu0 %v1383
        %v1896 = vpop.f32.mrf.mxu0
        %v1897 = vadd.f32 %v1784, %v1896
        %1898 = vmatmul.f32.gmra.mxu0 %v1385
        %v1899 = vpop.f32.mrf.mxu0
        %v1900 = vadd.f32 %v1787, %v1899
        %1901 = vmatmul.f32.gmra.mxu0 %v1387
        %v1902 = vpop.f32.mrf.mxu0
        %v1903 = vadd.f32 %v1790, %v1902
        %1904 = vmatmul.f32.gmra.mxu0 %v1389
        %v1905 = vpop.f32.mrf.mxu0
        %v1906 = vadd.f32 %v1793, %v1905
        %1907 = vmatmul.f32.gmra.mxu0 %v1391
        %v1908 = vpop.f32.mrf.mxu0
        %v1909 = vadd.f32 %v1796, %v1908
        %1910 = vmatmul.f32.gmra.mxu0 %v1393
        %v1911 = vpop.f32.mrf.mxu0
        %v1912 = vadd.f32 %v1799, %v1911
        %1913 = vmatmul.f32.gmra.mxu0 %v1395
        %v1914 = vpop.f32.mrf.mxu0
        %v1915 = vadd.f32 %v1802, %v1914
        %1916 = vmatmul.f32.gmra.mxu0 %v1397
        %v1917 = vpop.f32.mrf.mxu0
        %v1918 = vadd.f32 %v1805, %v1917
        %1919 = vdwg.mxu0
        %v1920 = vadd.f32 %v394, %v1599
        %v1921 = vadd.f32 %v395, %v1602
        %v1922 = vadd.f32 %v396, %v1605
        %v1923 = vadd.f32 %v397, %v1608
        %v1924 = vadd.f32 %v398, %v1611
        %v1925 = vadd.f32 %v399, %v1614
        %v1926 = vadd.f32 %v400, %v1617
        %v1927 = vadd.f32 %v401, %v1620
        %v1928 = vadd.f32 %v402, %v1623
        %v1929 = vadd.f32 %v403, %v1626
        %v1930 = vadd.f32 %v404, %v1629
        %v1931 = vadd.f32 %v405, %v1632
        %v1932 = vadd.f32 %v406, %v1635
        %v1933 = vadd.f32 %v407, %v1638
        %v1934 = vadd.f32 %v408, %v1641
        %v1935 = vadd.f32 %v409, %v1644
        %v1936 = vadd.f32 %v410, %v1647
        %v1937 = vadd.f32 %v411, %v1650
        %v1938 = vadd.f32 %v412, %v1653
        %v1939 = vadd.f32 %v413, %v1656
        %v1940 = vadd.f32 %v414, %v1659
        %v1941 = vadd.f32 %v415, %v1662
        %v1942 = vadd.f32 %v416, %v1665
        %v1943 = vadd.f32 %v417, %v1668
        %v1944 = vadd.f32 %v418, %v1671
        %v1945 = vadd.f32 %v419, %v1674
        %v1946 = vadd.f32 %v420, %v1677
        %v1947 = vadd.f32 %v421, %v1680
        %v1948 = vadd.f32 %v422, %v1683
        %v1949 = vadd.f32 %v423, %v1686
        %v1950 = vadd.f32 %v424, %v1689
        %v1951 = vadd.f32 %v425, %v1692
        %v1952 = vadd.f32 %v1920, %v1825
        %v1953 = vadd.f32 %v1921, %v1828
        %v1954 = vadd.f32 %v1922, %v1831
        %v1955 = vadd.f32 %v1923, %v1834
        %v1956 = vadd.f32 %v1924, %v1837
        %v1957 = vadd.f32 %v1925, %v1840
        %v1958 = vadd.f32 %v1926, %v1843
        %v1959 = vadd.f32 %v1927, %v1846
        %v1960 = vadd.f32 %v1928, %v1849
        %v1961 = vadd.f32 %v1929, %v1852
        %v1962 = vadd.f32 %v1930, %v1855
        %v1963 = vadd.f32 %v1931, %v1858
        %v1964 = vadd.f32 %v1932, %v1861
        %v1965 = vadd.f32 %v1933, %v1864
        %v1966 = vadd.f32 %v1934, %v1867
        %v1967 = vadd.f32 %v1935, %v1870
        %v1968 = vadd.f32 %v1936, %v1873
        %v1969 = vadd.f32 %v1937, %v1876
        %v1970 = vadd.f32 %v1938, %v1879
        %v1971 = vadd.f32 %v1939, %v1882
        %v1972 = vadd.f32 %v1940, %v1885
        %v1973 = vadd.f32 %v1941, %v1888
        %v1974 = vadd.f32 %v1942, %v1891
        %v1975 = vadd.f32 %v1943, %v1894
        %v1976 = vadd.f32 %v1944, %v1897
        %v1977 = vadd.f32 %v1945, %v1900
        %v1978 = vadd.f32 %v1946, %v1903
        %v1979 = vadd.f32 %v1947, %v1906
        %v1980 = vadd.f32 %v1948, %v1909
        %v1981 = vadd.f32 %v1949, %v1912
        %v1982 = vadd.f32 %v1950, %v1915
        %v1983 = vadd.f32 %v1951, %v1918
        %v1984 = vmul.f32 %v1952, 0.33333334
        %v1985 = vmul.f32 %v1953, 0.33333334
        %v1986 = vmul.f32 %v1954, 0.33333334
        %v1987 = vmul.f32 %v1955, 0.33333334
        %v1988 = vmul.f32 %v1956, 0.33333334
        %v1989 = vmul.f32 %v1957, 0.33333334
        %v1990 = vmul.f32 %v1958, 0.33333334
        %v1991 = vmul.f32 %v1959, 0.33333334
        %v1992 = vmul.f32 %v1960, 0.33333334
        %v1993 = vmul.f32 %v1961, 0.33333334
        %v1994 = vmul.f32 %v1962, 0.33333334
        %v1995 = vmul.f32 %v1963, 0.33333334
        %v1996 = vmul.f32 %v1964, 0.33333334
        %v1997 = vmul.f32 %v1965, 0.33333334
        %v1998 = vmul.f32 %v1966, 0.33333334
        %v1999 = vmul.f32 %v1967, 0.33333334
        %v2000 = vmul.f32 %v1968, 0.33333334
        %v2001 = vmul.f32 %v1969, 0.33333334
        %v2002 = vmul.f32 %v1970, 0.33333334
        %v2003 = vmul.f32 %v1971, 0.33333334
        %v2004 = vmul.f32 %v1972, 0.33333334
        %v2005 = vmul.f32 %v1973, 0.33333334
        %v2006 = vmul.f32 %v1974, 0.33333334
        %v2007 = vmul.f32 %v1975, 0.33333334
        %v2008 = vmul.f32 %v1976, 0.33333334
        %v2009 = vmul.f32 %v1977, 0.33333334
        %v2010 = vmul.f32 %v1978, 0.33333334
        %v2011 = vmul.f32 %v1979, 0.33333334
        %v2012 = vmul.f32 %v1980, 0.33333334
        %v2013 = vmul.f32 %v1981, 0.33333334
        %v2014 = vmul.f32 %v1982, 0.33333334
        %v2015 = vmul.f32 %v1983, 0.33333334
        %2016 = vst [vmem:[%s390] sm:$0xff] %v1984
        %2017 = vst [vmem:[%s390 + $0x8] sm:$0xff] %v1985
        %2018 = vst [vmem:[%s390 + $0x10] sm:$0xff] %v1986
        %2019 = vst [vmem:[%s390 + $0x18] sm:$0xff] %v1987
        %2020 = vst [vmem:[%s390 + $0x20] sm:$0xff] %v1988
        %2021 = vst [vmem:[%s390 + $0x28] sm:$0xff] %v1989
        %2022 = vst [vmem:[%s390 + $0x30] sm:$0xff] %v1990
        %2023 = vst [vmem:[%s390 + $0x38] sm:$0xff] %v1991
        %2024 = vst [vmem:[%s390 + $0x40] sm:$0xff] %v1992
        %2025 = vst [vmem:[%s390 + $0x48] sm:$0xff] %v1993
        %2026 = vst [vmem:[%s390 + $0x50] sm:$0xff] %v1994
        %2027 = vst [vmem:[%s390 + $0x58] sm:$0xff] %v1995
        %2028 = vst [vmem:[%s390 + $0x60] sm:$0xff] %v1996
        %2029 = vst [vmem:[%s390 + $0x68] sm:$0xff] %v1997
        %2030 = vst [vmem:[%s390 + $0x70] sm:$0xff] %v1998
        %2031 = vst [vmem:[%s390 + $0x78] sm:$0xff] %v1999
        %2032 = vst [vmem:[%s390 + $0x80] sm:$0xff] %v2000
        %2033 = vst [vmem:[%s390 + $0x88] sm:$0xff] %v2001
        %2034 = vst [vmem:[%s390 + $0x90] sm:$0xff] %v2002
        %2035 = vst [vmem:[%s390 + $0x98] sm:$0xff] %v2003
        %2036 = vst [vmem:[%s390 + $0xa0] sm:$0xff] %v2004
        %2037 = vst [vmem:[%s390 + $0xa8] sm:$0xff] %v2005
        %2038 = vst [vmem:[%s390 + $0xb0] sm:$0xff] %v2006
        %2039 = vst [vmem:[%s390 + $0xb8] sm:$0xff] %v2007
        %2040 = vst [vmem:[%s390 + $0xc0] sm:$0xff] %v2008
        %2041 = vst [vmem:[%s390 + $0xc8] sm:$0xff] %v2009
        %2042 = vst [vmem:[%s390 + $0xd0] sm:$0xff] %v2010
        %2043 = vst [vmem:[%s390 + $0xd8] sm:$0xff] %v2011
        %2044 = vst [vmem:[%s390 + $0xe0] sm:$0xff] %v2012
        %2045 = vst [vmem:[%s390 + $0xe8] sm:$0xff] %v2013
        %2046 = vst [vmem:[%s390 + $0xf0] sm:$0xff] %v2014
        %2047 = vst [vmem:[%s390 + $0xf8] sm:$0xff] %v2015
        %s2048 = sand.u32 %s193, 1
        %s2049 = scalar_lea.sflag [#allocation4], %s2048
        %s2050 = sand.u32 %s193, 1
        %s2051 = smul.addr %s2050, 256
        %s2052 = scalar_lea.vmem [#allocation11], %s2051
        // Predicated region
        $region69: #{tpu_custom_call.1} parent=47 // pred_check
          %p2053 = pneg %p203
        $region70: #{tpu_custom_call.1} parent=47 // pred_check_branch
          %2055 = sbr.rel (%p2053) target = $region72
        $region71: #{tpu_custom_call.1} parent=47 // pred_region
          %s2056 = smul.u32 32, %s28
          %2058 = vsyncadd %s2049, 0
          %s2059 = smul.addr %s2056, 8
          %s2060 = scalar_lea.hbm %s7, %s2059
          %s2061 = sshll.u32 %s2052, 4
          %s2062 = int_to_ptr.vmem [resolvable:$true] %s2061
          %s2063 = sshll.u32 %s2060, 4
          %s2064 = int_to_ptr.hbm [resolvable:$true] %s2063
          %2069 = dma.vmem_to_hbm [thread:$0]  %s2062, 4096, %s2064, %s2049, 128, 128, 8
        $region72: #{tpu_custom_call.1} parent=47 // pred_fallthru
          _
      $region48: #{tpu_custom_call.1} parent=5 // pred_fallthru
        _
      %p2070 = scmp.le.s32.totalorder 2, %s23
      // Predicated region
      $region73: #{tpu_custom_call.1} parent=5 // pred_check
        %p2071 = pneg %p2070
      $region74: #{tpu_custom_call.1} parent=5 // pred_check_branch
        %2073 = sbr.rel (%p2071) target = $region76
      $region75: #{tpu_custom_call.1} parent=5 // pred_region
        %s2074 = ssub.s32 %s23, 2
        // Predicated region
        $region77: #{tpu_custom_call.1} parent=75 // pred_check
          %p2075 = pneg %p209
        $region78: #{tpu_custom_call.1} parent=75 // pred_check_branch
          %2077 = sbr.rel (%p2075) target = $region80
        $region79: #{tpu_custom_call.1} parent=75 // pred_region
          %s2078 = sand.u32 %s194, 1
          %s2079 = scalar_lea.sflag [#allocation4], %s2078
          %s2080 = sand.u32 %s194, 1
          %s2081 = smul.addr %s2080, 256
          %s2082 = scalar_lea.vmem [#allocation11], %s2081
          %2084 = dma.done %s2079, 4096
        $region80: #{tpu_custom_call.1} parent=75 // pred_fallthru
          _
      $region76: #{tpu_custom_call.1} parent=5 // pred_fallthru
        _
    $region6: #{tpu_custom_call.1} parent=1 // loop_footer
      %s27 = sadd.s32 1, %s23
    $region7: #{tpu_custom_call.1} parent=1 // loop_footer_branch
      %22 = sbr.rel target = $region3
    $region8: #{tpu_custom_call.1} parent=1 // loop_exit
      _
    %2085 = vsyncpa [#allocation3], 1
    %s2086 = scalar_lea.sflag [#allocation3], 1
    %2087 = vsyncpa %s2086, 1
    %2088 = vsyncpa [#allocation6], 1
    %s2089 = scalar_lea.sflag [#allocation6], 1
    %2090 = vsyncpa %s2089, 1
    %2091 = vsyncpa [#allocation9], 1
    %2092 = vsyncpa [#allocation4], 1
    %s2093 = scalar_lea.sflag [#allocation4], 1
    %2094 = vsyncpa %s2093, 1

</llo_original>
